<compile_context>
chip_gen: v6e
topology: v6e:2x2x1
jax: 0.10.0
libtpu: 0.0.40
codegen_flags: <defaults>
</compile_context>

<pallas_src>
import functools
import math

import jax
import jax.numpy as jnp
from jax.experimental import pallas as pl
from jax.experimental.pallas import tpu as pltpu


def _cross_modal_attention_kernel(
    xd_ref, xm_ref, wdq_ref, wdod_ref, wmk_ref, wvy_ref, vec_ref,
    out_ref, attnw_ref, *, num_heads: int, eps: float):
  xd = xd_ref[0]                       # (Sd, Dd)
  xm = xm_ref[0]                       # (Sm, Dm)
  Sd = xd.shape[0]
  O = wdq_ref.shape[1]
  hd = O // num_heads

  # Packed vectors: row 0 b_q, 1 b_k, 2 b_y, 3 gamma, 4 beta (rows 5..7 pad).
  b_q = vec_ref[0:1, :]
  b_k = vec_ref[1:2, :]
  b_y = vec_ref[2:3, :]
  gamma = vec_ref[3:4, :]
  beta = vec_ref[4:5, :]

  # In-projections (weights pre-folded with modality projections; q is
  # additionally pre-scaled by 1/sqrt(head_dim)).
  q = jnp.dot(xd, wdq_ref[...], preferred_element_type=jnp.float32) + b_q    # (Sd, O)
  yd = jnp.dot(xd, wdod_ref[...], preferred_element_type=jnp.float32)        # (Sd, O)
  k = jnp.dot(xm, wmk_ref[...], preferred_element_type=jnp.float32) + b_k    # (Sm, O)
  vy = jnp.dot(xm, wvy_ref[...], preferred_element_type=jnp.float32)         # (Sm, H*O)

  # Per-head scores, stacked along sublanes -> a single softmax for all heads.
  s_parts = []
  for h in range(num_heads):
    qh = q[:, h * hd:(h + 1) * hd]                      # (Sd, hd)
    kh = k[:, h * hd:(h + 1) * hd]                      # (Sm, hd)
    s_parts.append(jax.lax.dot_general(                 # q @ k^T, no transpose
        qh, kh, (((1,), (1,)), ((), ())),
        preferred_element_type=jnp.float32))            # (Sd, Sm)
  s_all = jnp.concatenate(s_parts, axis=0)              # (H*Sd, Sm)

  m = jnp.max(s_all, axis=-1, keepdims=True)
  e = jnp.exp(s_all - m)
  inv = pl.reciprocal(jnp.sum(e, axis=-1, keepdims=True), approx=True)
  p_all = e * inv                                       # (H*Sd, Sm)

  # Attention weights output: mean over heads (cheap sublane slices).
  w_sum = p_all[0:Sd]
  for h in range(1, num_heads):
    w_sum = w_sum + p_all[h * Sd:(h + 1) * Sd]
  attnw_ref[0] = (w_sum * (1.0 / num_heads)).astype(attnw_ref.dtype)

  # Value path folded through out_proj + output Linear: accumulate per head
  # directly into y (no lane-dim concat of per-head contexts).
  y = yd + b_y
  for h in range(num_heads):
    ph = p_all[h * Sd:(h + 1) * Sd]                     # (Sd, Sm)
    vyh = vy[:, h * O:(h + 1) * O]                      # (Sm, O)
    y = y + jnp.dot(ph, vyh, preferred_element_type=jnp.float32)

  # LayerNorm + ReLU (dropout = identity in eval mode).
  mu = jnp.mean(y, axis=-1, keepdims=True)
  var = jnp.mean(jnp.square(y - mu), axis=-1, keepdims=True)
  yn = (y - mu) * jax.lax.rsqrt(var + eps)
  out_ref[0] = jnp.maximum(yn * gamma + beta, 0.0).astype(out_ref.dtype)


@functools.partial(jax.jit, static_argnames=("num_heads",))
def cross_modal_attention(dance, music, wd, bd, wm, bm, wq, bq, wk, bk, wv, bv,
                          wo, bo, wod, woa, bout, gamma, beta, *, num_heads):
  B, Sd, Dd = dance.shape
  _, Sm, Dm = music.shape
  O = wd.shape[1]
  hd = O // num_heads
  scale = 1.0 / math.sqrt(hd)

  # ---- algebraic weight folding (wrapper side, tiny matmuls) ----
  w_dq = (wd @ wq) * scale                      # (Dd, O)  dance->q, pre-scaled
  b_q = (bd @ wq + bq) * scale                  # (1, O)
  w_dod = wd @ wod                              # (Dd, O)  dance->output-linear half
  w_mk = wm @ wk                                # (Dm, O)  music->k
  b_k = bm @ wk + bk                            # (1, O)
  w_mv = wm @ wv                                # (Dm, O)  music->v
  b_v = bm @ wv + bv                            # (1, O)
  w_ctx = wo @ woa                              # (O, O)   out_proj->output-linear half
  # Per-head value->output fold: column block h = w_mv[:, h] @ w_ctx[h, :].
  w_vy = jnp.concatenate(
      [w_mv[:, h * hd:(h + 1) * hd] @ w_ctx[h * hd:(h + 1) * hd, :]
       for h in range(num_heads)], axis=1)      # (Dm, H*O)
  # Bias of the value path folds into b_y because softmax rows sum to 1.
  b_y = bd @ wod + b_v @ w_ctx + bo @ woa + bout  # (1, O)

  vecs = jnp.concatenate(
      [b_q, b_k, b_y, gamma, beta, jnp.zeros((3, O), jnp.float32)], axis=0)   # (8, O)

  kernel = functools.partial(_cross_modal_attention_kernel,
                             num_heads=num_heads, eps=1e-5)

  # Advisory cost estimate (kernel is tiny / overhead-dominated).
  flops_per_b = 2 * (2 * Sd * Dd * O + Sm * Dm * O + Sm * Dm * num_heads * O
                     + Sd * Sm * O + Sd * Sm * num_heads * O)
  bytes_accessed = 4 * (dance.size + music.size + w_dq.size + w_dod.size
                        + w_mk.size + w_vy.size + vecs.size
                        + B * Sd * O + B * Sd * Sm)
  cost = pl.CostEstimate(
      flops=B * flops_per_b,
      transcendentals=B * (num_heads * Sd * Sm + num_heads * Sd + Sd),
      bytes_accessed=int(bytes_accessed))

  rep2 = lambda b: (0, 0)
  return pl.pallas_call(
      kernel,
      out_shape=(jax.ShapeDtypeStruct((B, Sd, O), jnp.float32),
                 jax.ShapeDtypeStruct((B, Sd, Sm), jnp.float32)),
      grid=(B,),
      in_specs=[
          pl.BlockSpec((1, Sd, Dd), lambda b: (b, 0, 0)),
          pl.BlockSpec((1, Sm, Dm), lambda b: (b, 0, 0)),
          pl.BlockSpec((Dd, O), rep2),
          pl.BlockSpec((Dd, O), rep2),
          pl.BlockSpec((Dm, O), rep2),
          pl.BlockSpec((Dm, num_heads * O), rep2),
          pl.BlockSpec((8, O), rep2),
      ],
      out_specs=(pl.BlockSpec((1, Sd, O), lambda b: (b, 0, 0)),
                 pl.BlockSpec((1, Sd, Sm), lambda b: (b, 0, 0))),
      compiler_params=pltpu.CompilerParams(
          dimension_semantics=("parallel",)),
      cost_estimate=cost,
  )(dance, music, w_dq, w_dod, w_mk, w_vy, vecs)


def reference_forward(dance, music, wd, bd, wm, bm, wq, bq, wk, bk, wv, bv,
                      wo, bo, wod, woa, bout, gamma, beta, num_heads):
  """Pure-JAX replica of the PyTorch eval-mode forward (unfolded weights)."""
  O = wd.shape[1]
  hd = O // num_heads
  dance_proj = dance @ wd + bd[0]
  music_proj = music @ wm + bm[0]
  q = dance_proj @ wq + bq[0]
  k = music_proj @ wk + bk[0]
  v = music_proj @ wv + bv[0]
  B, Sd, _ = q.shape
  Sm = k.shape[1]
  qh = q.reshape(B, Sd, num_heads, hd).transpose(0, 2, 1, 3)
  kh = k.reshape(B, Sm, num_heads, hd).transpose(0, 2, 1, 3)
  vh = v.reshape(B, Sm, num_heads, hd).transpose(0, 2, 1, 3)
  s = jnp.einsum('bhqd,bhkd->bhqk', qh, kh) / jnp.sqrt(jnp.float32(hd))
  p = jax.nn.softmax(s, axis=-1)
  ctx = jnp.einsum('bhqk,bhkd->bhqd', p, vh)
  ctx = ctx.transpose(0, 2, 1, 3).reshape(B, Sd, O)
  attn_out = ctx @ wo + bo[0]
  attn_w = jnp.mean(p, axis=1)
  y = dance_proj @ wod + attn_out @ woa + bout[0]
  mu = jnp.mean(y, axis=-1, keepdims=True)
  var = jnp.mean((y - mu) ** 2, axis=-1, keepdims=True)
  yn = (y - mu) / jnp.sqrt(var + 1e-5)
  out = jax.nn.relu(yn * gamma[0] + beta[0])
  return out, attn_w


if __name__ == "__main__":
  # Small shapes consistent with (batch, dance_seq, dance_dim) / (batch, music_seq, music_dim).
  B, Sd, Sm = 2, 16, 8
  Dd, Dm, O = 64, 32, 64
  num_heads = 4            # head_dim = 16

  key = jax.random.PRNGKey(0)
  ks = jax.random.split(key, 20)
  dance = jax.random.normal(ks[0], (B, Sd, Dd), jnp.float32)
  music = jax.random.normal(ks[1], (B, Sm, Dm), jnp.float32)

  def w(k, shape, s=0.1):
    return jax.random.normal(k, shape, jnp.float32) * s

  wd = w(ks[2], (Dd, O));  bd = w(ks[3], (1, O))
  wm = w(ks[4], (Dm, O));  bm = w(ks[5], (1, O))
  wq = w(ks[6], (O, O));   bq = w(ks[7], (1, O))
  wk = w(ks[8], (O, O));   bk = w(ks[9], (1, O))
  wv = w(ks[10], (O, O));  bv = w(ks[11], (1, O))
  wo = w(ks[12], (O, O));  bo = w(ks[13], (1, O))
  wod = w(ks[14], (O, O))                                  # Linear(2O,O) half for dance_proj
  woa = w(ks[15], (O, O))                                  # Linear(2O,O) half for attn_out
  bout = w(ks[16], (1, O))
  gamma = 1.0 + w(ks[17], (1, O)); beta = w(ks[18], (1, O))

  out, attn_w = cross_modal_attention(
      dance, music, wd, bd, wm, bm, wq, bq, wk, bk, wv, bv,
      wo, bo, wod, woa, bout, gamma, beta, num_heads=num_heads)
  out = jax.block_until_ready(out)
  attn_w = jax.block_until_ready(attn_w)

  ref_out, ref_w = reference_forward(
      dance, music, wd, bd, wm, bm, wq, bq, wk, bk, wv, bv,
      wo, bo, wod, woa, bout, gamma, beta, num_heads)

  assert out.shape == (B, Sd, O)
  assert attn_w.shape == (B, Sd, Sm)
  # Tolerances relaxed vs. a pure-f32 path: the softmax denominator uses the
  # EUP approximate reciprocal (per perf review) and weights are algebraically
  # folded, so small (<<1%) deviations from the unfolded reference are expected.
  assert bool(jnp.allclose(out, ref_out, atol=5e-3, rtol=5e-3)), "output mismatch"
  assert bool(jnp.allclose(attn_w, ref_w, atol=5e-3, rtol=5e-3)), "attn-weight mismatch"
  print("KERNEL_OK")
</pallas_src>

<mosaic_0001>
module attributes {stable_mosaic.version = 11 : i64} {
  func.func @_cross_modal_attention_kernel(%arg0: i32, %arg1: memref<1x16x64xf32, #tpu.memory_space<vmem>>, %arg2: memref<1x8x32xf32, #tpu.memory_space<vmem>>, %arg3: memref<64x64xf32, #tpu.memory_space<vmem>>, %arg4: memref<64x64xf32, #tpu.memory_space<vmem>>, %arg5: memref<32x64xf32, #tpu.memory_space<vmem>>, %arg6: memref<32x256xf32, #tpu.memory_space<vmem>>, %arg7: memref<8x64xf32, #tpu.memory_space<vmem>>, %arg8: memref<1x16x64xf32, #tpu.memory_space<vmem>>, %arg9: memref<1x16x8xf32, #tpu.memory_space<vmem>>) attributes {dimension_semantics = [#tpu.dimension_semantics<parallel>], iteration_bounds = array<i64: 2>, scalar_prefetch = 0 : i64, scratch_operands = 0 : i64, tpu.core_type = #tpu.core_type<tc>, window_params = [{transform_indices = @transform_0, window_bounds = array<i64: 1, 16, 64>}, {transform_indices = @transform_1, window_bounds = array<i64: 1, 8, 32>}, {pipeline_mode = #tpu.pipeline_mode<synchronous>, transform_indices = @transform_2, window_bounds = array<i64: 64, 64>}, {pipeline_mode = #tpu.pipeline_mode<synchronous>, transform_indices = @transform_3, window_bounds = array<i64: 64, 64>}, {pipeline_mode = #tpu.pipeline_mode<synchronous>, transform_indices = @transform_4, window_bounds = array<i64: 32, 64>}, {pipeline_mode = #tpu.pipeline_mode<synchronous>, transform_indices = @transform_5, window_bounds = array<i64: 32, 256>}, {pipeline_mode = #tpu.pipeline_mode<synchronous>, transform_indices = @transform_6, window_bounds = array<i64: 8, 64>}, {transform_indices = @transform_7, window_bounds = array<i64: 1, 16, 64>}, {transform_indices = @transform_8, window_bounds = array<i64: 1, 16, 8>}]} {
    %c0 = arith.constant 0 : index
    %c0_0 = arith.constant 0 : index
    %c0_1 = arith.constant 0 : index
    %0 = vector.load %arg1[%c0, %c0_0, %c0_1] : memref<1x16x64xf32, #tpu.memory_space<vmem>>, vector<1x16x64xf32>
    %1 = vector.shape_cast %0 : vector<1x16x64xf32> to vector<16x64xf32>
    %c0_2 = arith.constant 0 : index
    %c0_3 = arith.constant 0 : index
    %c0_4 = arith.constant 0 : index
    %2 = vector.load %arg2[%c0_2, %c0_3, %c0_4] : memref<1x8x32xf32, #tpu.memory_space<vmem>>, vector<1x8x32xf32>
    %3 = vector.shape_cast %2 : vector<1x8x32xf32> to vector<8x32xf32>
    %c0_5 = arith.constant 0 : index
    %c0_6 = arith.constant 0 : index
    %4 = vector.load %arg7[%c0_5, %c0_6] : memref<8x64xf32, #tpu.memory_space<vmem>>, vector<1x64xf32>
    %c1 = arith.constant 1 : index
    %c0_7 = arith.constant 0 : index
    %5 = vector.load %arg7[%c1, %c0_7] : memref<8x64xf32, #tpu.memory_space<vmem>>, vector<1x64xf32>
    %c2 = arith.constant 2 : index
    %c0_8 = arith.constant 0 : index
    %6 = vector.load %arg7[%c2, %c0_8] : memref<8x64xf32, #tpu.memory_space<vmem>>, vector<1x64xf32>
    %c3 = arith.constant 3 : index
    %c0_9 = arith.constant 0 : index
    %7 = vector.load %arg7[%c3, %c0_9] : memref<8x64xf32, #tpu.memory_space<vmem>>, vector<1x64xf32>
    %c4 = arith.constant 4 : index
    %c0_10 = arith.constant 0 : index
    %8 = vector.load %arg7[%c4, %c0_10] : memref<8x64xf32, #tpu.memory_space<vmem>>, vector<1x64xf32>
    %c0_11 = arith.constant 0 : index
    %c0_12 = arith.constant 0 : index
    %9 = vector.load %arg3[%c0_11, %c0_12] : memref<64x64xf32, #tpu.memory_space<vmem>>, vector<64x64xf32>
    %cst = arith.constant dense<0.000000e+00> : vector<16x64xf32>
    %10 = tpu.matmul %1, %9, %cst {dimension_numbers = #tpu.dot_dimension_numbers<[1], [0], [0], [1], [0, 0, 1, 1], [], []>} : vector<16x64xf32>, vector<64x64xf32>, vector<16x64xf32> -> vector<16x64xf32>
    %11 = vector.broadcast %4 : vector<1x64xf32> to vector<16x64xf32>
    %12 = arith.addf %10, %11 : vector<16x64xf32>
    %c0_13 = arith.constant 0 : index
    %c0_14 = arith.constant 0 : index
    %13 = vector.load %arg4[%c0_13, %c0_14] : memref<64x64xf32, #tpu.memory_space<vmem>>, vector<64x64xf32>
    %cst_15 = arith.constant dense<0.000000e+00> : vector<16x64xf32>
    %14 = tpu.matmul %1, %13, %cst_15 {dimension_numbers = #tpu.dot_dimension_numbers<[1], [0], [0], [1], [0, 0, 1, 1], [], []>} : vector<16x64xf32>, vector<64x64xf32>, vector<16x64xf32> -> vector<16x64xf32>
    %c0_16 = arith.constant 0 : index
    %c0_17 = arith.constant 0 : index
    %15 = vector.load %arg5[%c0_16, %c0_17] : memref<32x64xf32, #tpu.memory_space<vmem>>, vector<32x64xf32>
    %cst_18 = arith.constant dense<0.000000e+00> : vector<8x64xf32>
    %16 = tpu.matmul %3, %15, %cst_18 {dimension_numbers = #tpu.dot_dimension_numbers<[1], [0], [0], [1], [0, 0, 1, 1], [], []>} : vector<8x32xf32>, vector<32x64xf32>, vector<8x64xf32> -> vector<8x64xf32>
    %17 = vector.broadcast %5 : vector<1x64xf32> to vector<8x64xf32>
    %18 = arith.addf %16, %17 : vector<8x64xf32>
    %c0_19 = arith.constant 0 : index
    %c0_20 = arith.constant 0 : index
    %19 = vector.load %arg6[%c0_19, %c0_20] : memref<32x256xf32, #tpu.memory_space<vmem>>, vector<32x256xf32>
    %cst_21 = arith.constant dense<0.000000e+00> : vector<8x256xf32>
    %20 = tpu.matmul %3, %19, %cst_21 {dimension_numbers = #tpu.dot_dimension_numbers<[1], [0], [0], [1], [0, 0, 1, 1], [], []>} : vector<8x32xf32>, vector<32x256xf32>, vector<8x256xf32> -> vector<8x256xf32>
    %21 = vector.extract_strided_slice %12 {offsets = [0, 0], sizes = [16, 16], strides = [1, 1]} : vector<16x64xf32> to vector<16x16xf32>
    %22 = vector.extract_strided_slice %18 {offsets = [0, 0], sizes = [8, 16], strides = [1, 1]} : vector<8x64xf32> to vector<8x16xf32>
    %cst_22 = arith.constant dense<0.000000e+00> : vector<16x8xf32>
    %23 = tpu.matmul %21, %22, %cst_22 {dimension_numbers = #tpu.dot_dimension_numbers<[1], [1], [0], [0], [0, 0, 1, 0], [], []>} : vector<16x16xf32>, vector<8x16xf32>, vector<16x8xf32> -> vector<16x8xf32>
    %24 = vector.extract_strided_slice %12 {offsets = [0, 16], sizes = [16, 16], strides = [1, 1]} : vector<16x64xf32> to vector<16x16xf32>
    %25 = vector.extract_strided_slice %18 {offsets = [0, 16], sizes = [8, 16], strides = [1, 1]} : vector<8x64xf32> to vector<8x16xf32>
    %cst_23 = arith.constant dense<0.000000e+00> : vector<16x8xf32>
    %26 = tpu.matmul %24, %25, %cst_23 {dimension_numbers = #tpu.dot_dimension_numbers<[1], [1], [0], [0], [0, 0, 1, 0], [], []>} : vector<16x16xf32>, vector<8x16xf32>, vector<16x8xf32> -> vector<16x8xf32>
    %27 = vector.extract_strided_slice %12 {offsets = [0, 32], sizes = [16, 16], strides = [1, 1]} : vector<16x64xf32> to vector<16x16xf32>
    %28 = vector.extract_strided_slice %18 {offsets = [0, 32], sizes = [8, 16], strides = [1, 1]} : vector<8x64xf32> to vector<8x16xf32>
    %cst_24 = arith.constant dense<0.000000e+00> : vector<16x8xf32>
    %29 = tpu.matmul %27, %28, %cst_24 {dimension_numbers = #tpu.dot_dimension_numbers<[1], [1], [0], [0], [0, 0, 1, 0], [], []>} : vector<16x16xf32>, vector<8x16xf32>, vector<16x8xf32> -> vector<16x8xf32>
    %30 = vector.extract_strided_slice %12 {offsets = [0, 48], sizes = [16, 16], strides = [1, 1]} : vector<16x64xf32> to vector<16x16xf32>
    %31 = vector.extract_strided_slice %18 {offsets = [0, 48], sizes = [8, 16], strides = [1, 1]} : vector<8x64xf32> to vector<8x16xf32>
    %cst_25 = arith.constant dense<0.000000e+00> : vector<16x8xf32>
    %32 = tpu.matmul %30, %31, %cst_25 {dimension_numbers = #tpu.dot_dimension_numbers<[1], [1], [0], [0], [0, 0, 1, 0], [], []>} : vector<16x16xf32>, vector<8x16xf32>, vector<16x8xf32> -> vector<16x8xf32>
    %33 = tpu.concatenate %23, %26, %29, %32 in 0 : vector<16x8xf32>, vector<16x8xf32>, vector<16x8xf32>, vector<16x8xf32> -> vector<64x8xf32>
    %cst_26 = arith.constant dense<0xFF800000> : vector<64xf32>
    %34 = vector.multi_reduction <maximumf>, %33, %cst_26 [1] : vector<64x8xf32> to vector<64xf32>
    %35 = vector.shape_cast %34 : vector<64xf32> to vector<64x1xf32>
    %36 = vector.broadcast %35 : vector<64x1xf32> to vector<64x8xf32>
    %37 = arith.subf %33, %36 : vector<64x8xf32>
    %38 = math.exp %37 : vector<64x8xf32>
    %cst_27 = arith.constant dense<0.000000e+00> : vector<64xf32>
    %39 = vector.multi_reduction <add>, %38, %cst_27 [1] : vector<64x8xf32> to vector<64xf32>
    %40 = vector.shape_cast %39 : vector<64xf32> to vector<64x1xf32>
    %41 = tpu.reciprocal %40 {approx = true} : vector<64x1xf32> -> vector<64x1xf32>
    %42 = vector.broadcast %41 : vector<64x1xf32> to vector<64x8xf32>
    %43 = arith.mulf %38, %42 : vector<64x8xf32>
    %44 = vector.extract_strided_slice %43 {offsets = [0, 0], sizes = [16, 8], strides = [1, 1]} : vector<64x8xf32> to vector<16x8xf32>
    %45 = vector.extract_strided_slice %43 {offsets = [16, 0], sizes = [16, 8], strides = [1, 1]} : vector<64x8xf32> to vector<16x8xf32>
    %46 = arith.addf %44, %45 : vector<16x8xf32>
    %47 = vector.extract_strided_slice %43 {offsets = [32, 0], sizes = [16, 8], strides = [1, 1]} : vector<64x8xf32> to vector<16x8xf32>
    %48 = arith.addf %46, %47 : vector<16x8xf32>
    %49 = vector.extract_strided_slice %43 {offsets = [48, 0], sizes = [16, 8], strides = [1, 1]} : vector<64x8xf32> to vector<16x8xf32>
    %50 = arith.addf %48, %49 : vector<16x8xf32>
    %cst_28 = arith.constant 2.500000e-01 : f32
    %51 = vector.broadcast %cst_28 : f32 to vector<16x8xf32>
    %52 = arith.mulf %50, %51 : vector<16x8xf32>
    %c0_29 = arith.constant 0 : index
    %c0_30 = arith.constant 0 : index
    %c0_31 = arith.constant 0 : index
    %53 = vector.load %arg9[%c0_29, %c0_30, %c0_31] : memref<1x16x8xf32, #tpu.memory_space<vmem>>, vector<1x16x8xf32>
    %54 = vector.shape_cast %53 : vector<1x16x8xf32> to vector<16x8xf32>
    %55 = vector.shape_cast %52 : vector<16x8xf32> to vector<1x16x8xf32>
    tpu.vector_store %arg9[%c0_29, %c0_30, %c0_31], %55 {strides = array<i32>} : memref<1x16x8xf32, #tpu.memory_space<vmem>>, vector<1x16x8xf32>,
    %56 = vector.broadcast %6 : vector<1x64xf32> to vector<16x64xf32>
    %57 = arith.addf %14, %56 : vector<16x64xf32>
    %58 = vector.extract_strided_slice %43 {offsets = [0, 0], sizes = [16, 8], strides = [1, 1]} : vector<64x8xf32> to vector<16x8xf32>
    %59 = vector.extract_strided_slice %20 {offsets = [0, 0], sizes = [8, 64], strides = [1, 1]} : vector<8x256xf32> to vector<8x64xf32>
    %cst_32 = arith.constant dense<0.000000e+00> : vector<16x64xf32>
    %60 = tpu.matmul %58, %59, %cst_32 {dimension_numbers = #tpu.dot_dimension_numbers<[1], [0], [0], [1], [0, 0, 1, 1], [], []>} : vector<16x8xf32>, vector<8x64xf32>, vector<16x64xf32> -> vector<16x64xf32>
    %61 = arith.addf %57, %60 : vector<16x64xf32>
    %62 = vector.extract_strided_slice %43 {offsets = [16, 0], sizes = [16, 8], strides = [1, 1]} : vector<64x8xf32> to vector<16x8xf32>
    %63 = vector.extract_strided_slice %20 {offsets = [0, 64], sizes = [8, 64], strides = [1, 1]} : vector<8x256xf32> to vector<8x64xf32>
    %cst_33 = arith.constant dense<0.000000e+00> : vector<16x64xf32>
    %64 = tpu.matmul %62, %63, %cst_33 {dimension_numbers = #tpu.dot_dimension_numbers<[1], [0], [0], [1], [0, 0, 1, 1], [], []>} : vector<16x8xf32>, vector<8x64xf32>, vector<16x64xf32> -> vector<16x64xf32>
    %65 = arith.addf %61, %64 : vector<16x64xf32>
    %66 = vector.extract_strided_slice %43 {offsets = [32, 0], sizes = [16, 8], strides = [1, 1]} : vector<64x8xf32> to vector<16x8xf32>
    %67 = vector.extract_strided_slice %20 {offsets = [0, 128], sizes = [8, 64], strides = [1, 1]} : vector<8x256xf32> to vector<8x64xf32>
    %cst_34 = arith.constant dense<0.000000e+00> : vector<16x64xf32>
    %68 = tpu.matmul %66, %67, %cst_34 {dimension_numbers = #tpu.dot_dimension_numbers<[1], [0], [0], [1], [0, 0, 1, 1], [], []>} : vector<16x8xf32>, vector<8x64xf32>, vector<16x64xf32> -> vector<16x64xf32>
    %69 = arith.addf %65, %68 : vector<16x64xf32>
    %70 = vector.extract_strided_slice %43 {offsets = [48, 0], sizes = [16, 8], strides = [1, 1]} : vector<64x8xf32> to vector<16x8xf32>
    %71 = vector.extract_strided_slice %20 {offsets = [0, 192], sizes = [8, 64], strides = [1, 1]} : vector<8x256xf32> to vector<8x64xf32>
    %cst_35 = arith.constant dense<0.000000e+00> : vector<16x64xf32>
    %72 = tpu.matmul %70, %71, %cst_35 {dimension_numbers = #tpu.dot_dimension_numbers<[1], [0], [0], [1], [0, 0, 1, 1], [], []>} : vector<16x8xf32>, vector<8x64xf32>, vector<16x64xf32> -> vector<16x64xf32>
    %73 = arith.addf %69, %72 : vector<16x64xf32>
    %cst_36 = arith.constant dense<0.000000e+00> : vector<16xf32>
    %74 = vector.multi_reduction <add>, %73, %cst_36 [1] : vector<16x64xf32> to vector<16xf32>
    %75 = vector.shape_cast %74 : vector<16xf32> to vector<16x1xf32>
    %cst_37 = arith.constant 6.400000e+01 : f32
    %76 = vector.broadcast %cst_37 : f32 to vector<16x1xf32>
    %77 = arith.divf %75, %76 : vector<16x1xf32>
    %78 = vector.broadcast %77 : vector<16x1xf32> to vector<16x64xf32>
    %79 = arith.subf %73, %78 : vector<16x64xf32>
    %80 = arith.mulf %79, %79 : vector<16x64xf32>
    %cst_38 = arith.constant dense<0.000000e+00> : vector<16xf32>
    %81 = vector.multi_reduction <add>, %80, %cst_38 [1] : vector<16x64xf32> to vector<16xf32>
    %82 = vector.shape_cast %81 : vector<16xf32> to vector<16x1xf32>
    %cst_39 = arith.constant 6.400000e+01 : f32
    %83 = vector.broadcast %cst_39 : f32 to vector<16x1xf32>
    %84 = arith.divf %82, %83 : vector<16x1xf32>
    %85 = vector.broadcast %77 : vector<16x1xf32> to vector<16x64xf32>
    %86 = arith.subf %73, %85 : vector<16x64xf32>
    %cst_40 = arith.constant 9.99999974E-6 : f32
    %87 = vector.broadcast %cst_40 : f32 to vector<16x1xf32>
    %88 = arith.addf %84, %87 : vector<16x1xf32>
    %89 = math.rsqrt %88 : vector<16x1xf32>
    %90 = vector.broadcast %89 : vector<16x1xf32> to vector<16x64xf32>
    %91 = arith.mulf %86, %90 : vector<16x64xf32>
    %92 = vector.broadcast %7 : vector<1x64xf32> to vector<16x64xf32>
    %93 = arith.mulf %91, %92 : vector<16x64xf32>
    %94 = vector.broadcast %8 : vector<1x64xf32> to vector<16x64xf32>
    %95 = arith.addf %93, %94 : vector<16x64xf32>
    %cst_41 = arith.constant 0.000000e+00 : f32
    %96 = vector.broadcast %cst_41 : f32 to vector<16x64xf32>
    %97 = arith.maximumf %95, %96 : vector<16x64xf32>
    %c0_42 = arith.constant 0 : index
    %c0_43 = arith.constant 0 : index
    %c0_44 = arith.constant 0 : index
    %98 = vector.load %arg8[%c0_42, %c0_43, %c0_44] : memref<1x16x64xf32, #tpu.memory_space<vmem>>, vector<1x16x64xf32>
    %99 = vector.shape_cast %98 : vector<1x16x64xf32> to vector<16x64xf32>
    %100 = vector.shape_cast %97 : vector<16x64xf32> to vector<1x16x64xf32>
    tpu.vector_store %arg8[%c0_42, %c0_43, %c0_44], %100 {strides = array<i32>} : memref<1x16x64xf32, #tpu.memory_space<vmem>>, vector<1x16x64xf32>,
    return
  }
  func.func @transform_0(%arg0: i32) -> (i32, i32, i32) {
    %c0_i32 = arith.constant 0 : i32
    %c0_i32_0 = arith.constant 0 : i32
    %c0_i32_1 = arith.constant 0 : i32
    return %arg0, %c0_i32, %c0_i32_0 : i32, i32, i32
  }
  func.func @transform_1(%arg0: i32) -> (i32, i32, i32) {
    %c0_i32 = arith.constant 0 : i32
    %c0_i32_0 = arith.constant 0 : i32
    %c0_i32_1 = arith.constant 0 : i32
    return %arg0, %c0_i32, %c0_i32_0 : i32, i32, i32
  }
  func.func @transform_2(%arg0: i32) -> (i32, i32) {
    %c0_i32 = arith.constant 0 : i32
    %c0_i32_0 = arith.constant 0 : i32
    %c0_i32_1 = arith.constant 0 : i32
    return %c0_i32, %c0_i32_0 : i32, i32
  }
  func.func @transform_3(%arg0: i32) -> (i32, i32) {
    %c0_i32 = arith.constant 0 : i32
    %c0_i32_0 = arith.constant 0 : i32
    %c0_i32_1 = arith.constant 0 : i32
    return %c0_i32, %c0_i32_0 : i32, i32
  }
  func.func @transform_4(%arg0: i32) -> (i32, i32) {
    %c0_i32 = arith.constant 0 : i32
    %c0_i32_0 = arith.constant 0 : i32
    %c0_i32_1 = arith.constant 0 : i32
    return %c0_i32, %c0_i32_0 : i32, i32
  }
  func.func @transform_5(%arg0: i32) -> (i32, i32) {
    %c0_i32 = arith.constant 0 : i32
    %c0_i32_0 = arith.constant 0 : i32
    %c0_i32_1 = arith.constant 0 : i32
    return %c0_i32, %c0_i32_0 : i32, i32
  }
  func.func @transform_6(%arg0: i32) -> (i32, i32) {
    %c0_i32 = arith.constant 0 : i32
    %c0_i32_0 = arith.constant 0 : i32
    %c0_i32_1 = arith.constant 0 : i32
    return %c0_i32, %c0_i32_0 : i32, i32
  }
  func.func @transform_7(%arg0: i32) -> (i32, i32, i32) {
    %c0_i32 = arith.constant 0 : i32
    %c0_i32_0 = arith.constant 0 : i32
    %c0_i32_1 = arith.constant 0 : i32
    return %arg0, %c0_i32, %c0_i32_0 : i32, i32, i32
  }
  func.func @transform_8(%arg0: i32) -> (i32, i32, i32) {
    %c0_i32 = arith.constant 0 : i32
    %c0_i32_0 = arith.constant 0 : i32
    %c0_i32_1 = arith.constant 0 : i32
    return %arg0, %c0_i32, %c0_i32_0 : i32, i32, i32
  }
}

</mosaic_0001>

<llo_original>
// kernel: cross_modal_attention.1
$region0: #{cross_modal_attention.1}
  #allocation0 [shape = 'u32[]', space=smem, size = 0x4, offset = 0x4, fixed_abs, tag = 'smem constant byte address 0x4 - core index']
  #allocation1 [shape = 'u32[144,128]{1,0:T(1,128)}', space=vmem, size = 0x12000, scoped, tag = 'internal scratch']
  %s0 = inlined_call_operand.vmem [shape: f32[2,16,64], index: 0, kind: input, shape index: {}]
  %s1 = inlined_call_operand.vmem [shape: f32[2,8,32], index: 1, kind: input, shape index: {}]
  %s2 = inlined_call_operand.vmem [shape: f32[64,64], index: 2, kind: input, shape index: {}]
  %s3 = inlined_call_operand.vmem [shape: f32[64,64], index: 3, kind: input, shape index: {}]
  %s4 = inlined_call_operand.vmem [shape: f32[32,64], index: 4, kind: input, shape index: {}]
  %s5 = inlined_call_operand.vmem [shape: f32[32,256], index: 5, kind: input, shape index: {}]
  %s6 = inlined_call_operand.vmem [shape: f32[8,64], index: 6, kind: input, shape index: {}]
  %s7 = inlined_call_operand.hbm [shape: f32[2,16,64], index: 7, kind: output, shape index: {0}]
  %s8 = inlined_call_operand.vmem [shape: f32[2,16,8], index: 8, kind: output, shape index: {1}]
  %9 = xla_tuple %s7, %s8
  %s10 = sld [smem:[#allocation0]]
  $region69: #{cross_modal_attention.1} parent=0
    _
  %s12 = ssub.s32 1, %s10
  %s13 = scalar_select 0, %s12, %s10
  $region1: #{cross_modal_attention.1} parent=0
    #allocation2 [shape = 'u8[16384]{0}', space=vmem, size = 0x4000, scoped, tag = 'output window, operand 0']
    #allocation3 [shape = 's32[2]{0}', space=sflag, size = 0x8, scoped, tag = 'scoped memory for cross_modal_attention.1']
    %14 = vsyncpa [#allocation3], 0
    %s15 = scalar_lea.sflag [#allocation3], 1
    %16 = vsyncpa %s15, 0
    loop: start=0, step=1, limit=4
    $region2: #{cross_modal_attention.1} parent=1 // loop_pre_header
      _
    $region3: #{cross_modal_attention.1} parent=1 // loop_header
      %s18 = sphi 0, %s22
      %p19 = scmp.ge.s32.totalorder %s18, 4
      %s28 = sphi 0, %s30
      %s31 = sphi 0, %s28
      %s32 = sphi 0, %s31
      %s48 = sphi 0, %s32
      %s54 = sphi 0, %s56
      %s57 = sphi 0, %s54
      %s58 = sphi 0, %s57
      %s74 = sphi 0, %s58
      %s78 = sphi 0, %s78
      %s80 = sphi 0, %s78
      %s81 = sphi 0, %s80
      %s95 = sphi 0, %s81
      %s99 = sphi 0, %s99
      %s101 = sphi 0, %s99
      %s102 = sphi 0, %s101
      %s116 = sphi 0, %s102
      %s120 = sphi 0, %s120
      %s122 = sphi 0, %s120
      %s123 = sphi 0, %s122
      %s137 = sphi 0, %s123
      %s141 = sphi 0, %s141
      %s143 = sphi 0, %s141
      %s144 = sphi 0, %s143
      %s158 = sphi 0, %s144
      %s162 = sphi 0, %s162
      %s164 = sphi 0, %s162
      %s165 = sphi 0, %s164
      %s179 = sphi 0, %s165
      %s185 = sphi 0, %s187
      %s188 = sphi 0, %s185
      %s189 = sphi 0, %s188
      %s205 = sphi 0, %s189
      %s211 = sphi 0, %s213
      %s214 = sphi 0, %s211
      %s215 = sphi 0, %s214
      %s231 = sphi 0, %s215
    $region4: #{cross_modal_attention.1} parent=1 // loop_header_branch
      %21 = sbr.rel (%p19) target = $region8
    $region5: #{cross_modal_attention.1} parent=1 // loop_body
      %s23 = ssub.s32 %s18, 1
      %s24 = ssub.s32 %s18, 2
      %s25 = sadd.s32 %s18, 1
      %s26 = ssub.s32 %s18, %s25
      %p27 = scmp.eq.s32.totalorder %s26, 0
      %s29 = sadd.s32 %s28, 1
      %s30 = scalar_select %p27, %s28, %s29
      %p33 = pneg %p27
      %p34 = scmp.eq.s32.totalorder %s18, 1
      %p35 = por %p33, %p34
      %p36 = scmp.ne.s32.totalorder %s28, %s31
      %p37 = scmp.eq.s32.totalorder %s18, 0
      %p38 = por %p36, %p37
      %p39 = scmp.ne.s32.totalorder %s28, %s31
      %p40 = scmp.eq.s32.totalorder %s23, 1
      %p41 = por %p39, %p40
      %p42 = scmp.ne.s32.totalorder %s31, %s32
      %p43 = scmp.eq.s32.totalorder %s23, 0
      %p44 = por %p42, %p43
      %p45 = scmp.ne.s32.totalorder %s31, %s32
      %p46 = scmp.eq.s32.totalorder %s24, 1
      %p47 = por %p45, %p46
      %p49 = scmp.ne.s32.totalorder %s32, %s48
      %p50 = scmp.eq.s32.totalorder %s24, 0
      %p51 = por %p49, %p50
      %s52 = ssub.s32 %s18, %s25
      %p53 = scmp.eq.s32.totalorder %s52, 0
      %s55 = sadd.s32 %s54, 1
      %s56 = scalar_select %p53, %s54, %s55
      %p59 = pneg %p53
      %p60 = scmp.eq.s32.totalorder %s18, 1
      %p61 = por %p59, %p60
      %p62 = scmp.ne.s32.totalorder %s54, %s57
      %p63 = scmp.eq.s32.totalorder %s18, 0
      %p64 = por %p62, %p63
      %p65 = scmp.ne.s32.totalorder %s54, %s57
      %p66 = scmp.eq.s32.totalorder %s23, 1
      %p67 = por %p65, %p66
      %p68 = scmp.ne.s32.totalorder %s57, %s58
      %p69 = scmp.eq.s32.totalorder %s23, 0
      %p70 = por %p68, %p69
      %p71 = scmp.ne.s32.totalorder %s57, %s58
      %p72 = scmp.eq.s32.totalorder %s24, 1
      %p73 = por %p71, %p72
      %p75 = scmp.ne.s32.totalorder %s58, %s74
      %p76 = scmp.eq.s32.totalorder %s24, 0
      %p77 = por %p75, %p76
      %s79 = sadd.s32 %s78, 1
      %p82 = scmp.eq.s32.totalorder %s18, 1
      %p83 = scmp.ne.s32.totalorder %s78, %s80
      %p84 = scmp.eq.s32.totalorder %s18, 0
      %p85 = por %p83, %p84
      %p86 = scmp.ne.s32.totalorder %s78, %s80
      %p87 = scmp.eq.s32.totalorder %s23, 1
      %p88 = por %p86, %p87
      %p89 = scmp.ne.s32.totalorder %s80, %s81
      %p90 = scmp.eq.s32.totalorder %s23, 0
      %p91 = por %p89, %p90
      %p92 = scmp.ne.s32.totalorder %s80, %s81
      %p93 = scmp.eq.s32.totalorder %s24, 1
      %p94 = por %p92, %p93
      %p96 = scmp.ne.s32.totalorder %s81, %s95
      %p97 = scmp.eq.s32.totalorder %s24, 0
      %p98 = por %p96, %p97
      %s100 = sadd.s32 %s99, 1
      %p103 = scmp.eq.s32.totalorder %s18, 1
      %p104 = scmp.ne.s32.totalorder %s99, %s101
      %p105 = scmp.eq.s32.totalorder %s18, 0
      %p106 = por %p104, %p105
      %p107 = scmp.ne.s32.totalorder %s99, %s101
      %p108 = scmp.eq.s32.totalorder %s23, 1
      %p109 = por %p107, %p108
      %p110 = scmp.ne.s32.totalorder %s101, %s102
      %p111 = scmp.eq.s32.totalorder %s23, 0
      %p112 = por %p110, %p111
      %p113 = scmp.ne.s32.totalorder %s101, %s102
      %p114 = scmp.eq.s32.totalorder %s24, 1
      %p115 = por %p113, %p114
      %p117 = scmp.ne.s32.totalorder %s102, %s116
      %p118 = scmp.eq.s32.totalorder %s24, 0
      %p119 = por %p117, %p118
      %s121 = sadd.s32 %s120, 1
      %p124 = scmp.eq.s32.totalorder %s18, 1
      %p125 = scmp.ne.s32.totalorder %s120, %s122
      %p126 = scmp.eq.s32.totalorder %s18, 0
      %p127 = por %p125, %p126
      %p128 = scmp.ne.s32.totalorder %s120, %s122
      %p129 = scmp.eq.s32.totalorder %s23, 1
      %p130 = por %p128, %p129
      %p131 = scmp.ne.s32.totalorder %s122, %s123
      %p132 = scmp.eq.s32.totalorder %s23, 0
      %p133 = por %p131, %p132
      %p134 = scmp.ne.s32.totalorder %s122, %s123
      %p135 = scmp.eq.s32.totalorder %s24, 1
      %p136 = por %p134, %p135
      %p138 = scmp.ne.s32.totalorder %s123, %s137
      %p139 = scmp.eq.s32.totalorder %s24, 0
      %p140 = por %p138, %p139
      %s142 = sadd.s32 %s141, 1
      %p145 = scmp.eq.s32.totalorder %s18, 1
      %p146 = scmp.ne.s32.totalorder %s141, %s143
      %p147 = scmp.eq.s32.totalorder %s18, 0
      %p148 = por %p146, %p147
      %p149 = scmp.ne.s32.totalorder %s141, %s143
      %p150 = scmp.eq.s32.totalorder %s23, 1
      %p151 = por %p149, %p150
      %p152 = scmp.ne.s32.totalorder %s143, %s144
      %p153 = scmp.eq.s32.totalorder %s23, 0
      %p154 = por %p152, %p153
      %p155 = scmp.ne.s32.totalorder %s143, %s144
      %p156 = scmp.eq.s32.totalorder %s24, 1
      %p157 = por %p155, %p156
      %p159 = scmp.ne.s32.totalorder %s144, %s158
      %p160 = scmp.eq.s32.totalorder %s24, 0
      %p161 = por %p159, %p160
      %s163 = sadd.s32 %s162, 1
      %p166 = scmp.eq.s32.totalorder %s18, 1
      %p167 = scmp.ne.s32.totalorder %s162, %s164
      %p168 = scmp.eq.s32.totalorder %s18, 0
      %p169 = por %p167, %p168
      %p170 = scmp.ne.s32.totalorder %s162, %s164
      %p171 = scmp.eq.s32.totalorder %s23, 1
      %p172 = por %p170, %p171
      %p173 = scmp.ne.s32.totalorder %s164, %s165
      %p174 = scmp.eq.s32.totalorder %s23, 0
      %p175 = por %p173, %p174
      %p176 = scmp.ne.s32.totalorder %s164, %s165
      %p177 = scmp.eq.s32.totalorder %s24, 1
      %p178 = por %p176, %p177
      %p180 = scmp.ne.s32.totalorder %s165, %s179
      %p181 = scmp.eq.s32.totalorder %s24, 0
      %p182 = por %p180, %p181
      %s183 = ssub.s32 %s18, %s25
      %p184 = scmp.eq.s32.totalorder %s183, 0
      %s186 = sadd.s32 %s185, 1
      %s187 = scalar_select %p184, %s185, %s186
      %p190 = pneg %p184
      %p191 = scmp.eq.s32.totalorder %s18, 1
      %p192 = por %p190, %p191
      %p193 = scmp.ne.s32.totalorder %s185, %s188
      %p194 = scmp.eq.s32.totalorder %s18, 0
      %p195 = por %p193, %p194
      %p196 = scmp.ne.s32.totalorder %s185, %s188
      %p197 = scmp.eq.s32.totalorder %s23, 1
      %p198 = por %p196, %p197
      %p199 = scmp.ne.s32.totalorder %s188, %s189
      %p200 = scmp.eq.s32.totalorder %s23, 0
      %p201 = por %p199, %p200
      %p202 = scmp.ne.s32.totalorder %s188, %s189
      %p203 = scmp.eq.s32.totalorder %s24, 1
      %p204 = por %p202, %p203
      %p206 = scmp.ne.s32.totalorder %s189, %s205
      %p207 = scmp.eq.s32.totalorder %s24, 0
      %p208 = por %p206, %p207
      %s209 = ssub.s32 %s18, %s25
      %p210 = scmp.eq.s32.totalorder %s209, 0
      %s212 = sadd.s32 %s211, 1
      %s213 = scalar_select %p210, %s211, %s212
      %p216 = pneg %p210
      %p217 = scmp.eq.s32.totalorder %s18, 1
      %p218 = por %p216, %p217
      %p219 = scmp.ne.s32.totalorder %s211, %s214
      %p220 = scmp.eq.s32.totalorder %s18, 0
      %p221 = por %p219, %p220
      %p222 = scmp.ne.s32.totalorder %s211, %s214
      %p223 = scmp.eq.s32.totalorder %s23, 1
      %p224 = por %p222, %p223
      %p225 = scmp.ne.s32.totalorder %s214, %s215
      %p226 = scmp.eq.s32.totalorder %s23, 0
      %p227 = por %p225, %p226
      %p228 = scmp.ne.s32.totalorder %s214, %s215
      %p229 = scmp.eq.s32.totalorder %s24, 1
      %p230 = por %p228, %p229
      %p232 = scmp.ne.s32.totalorder %s215, %s231
      %p233 = scmp.eq.s32.totalorder %s24, 0
      %p234 = por %p232, %p233
      %p235 = scmp.le.s32.totalorder 1, %s18
      %p236 = scmp.lt.s32.totalorder %s18, 3
      %p237 = pnand %p235, %p236
      %p238 = pneg %p237
      // Predicated region
      $region9: #{cross_modal_attention.1} parent=5 // pred_check
        _
      $region10: #{cross_modal_attention.1} parent=5 // pred_check_branch
        %240 = sbr.rel (%p237) target = $region12
      $region11: #{cross_modal_attention.1} parent=5 // pred_region
        %s241 = ssub.s32 %s18, 1
        // Predicated region
        $region13: #{cross_modal_attention.1} parent=11 // pred_check
          %p242 = pneg %p91
        $region14: #{cross_modal_attention.1} parent=11 // pred_check_branch
          %244 = sbr.rel (%p242) target = $region16
        $region15: #{cross_modal_attention.1} parent=11 // pred_region
          _
        $region16: #{cross_modal_attention.1} parent=11 // pred_fallthru
          _
        // Predicated region
        $region17: #{cross_modal_attention.1} parent=11 // pred_check
          %p245 = pneg %p112
        $region18: #{cross_modal_attention.1} parent=11 // pred_check_branch
          %247 = sbr.rel (%p245) target = $region20
        $region19: #{cross_modal_attention.1} parent=11 // pred_region
          _
        $region20: #{cross_modal_attention.1} parent=11 // pred_fallthru
          _
        // Predicated region
        $region21: #{cross_modal_attention.1} parent=11 // pred_check
          %p248 = pneg %p133
        $region22: #{cross_modal_attention.1} parent=11 // pred_check_branch
          %250 = sbr.rel (%p248) target = $region24
        $region23: #{cross_modal_attention.1} parent=11 // pred_region
          _
        $region24: #{cross_modal_attention.1} parent=11 // pred_fallthru
          _
        // Predicated region
        $region25: #{cross_modal_attention.1} parent=11 // pred_check
          %p251 = pneg %p154
        $region26: #{cross_modal_attention.1} parent=11 // pred_check_branch
          %253 = sbr.rel (%p251) target = $region28
        $region27: #{cross_modal_attention.1} parent=11 // pred_region
          _
        $region28: #{cross_modal_attention.1} parent=11 // pred_fallthru
          _
        // Predicated region
        $region29: #{cross_modal_attention.1} parent=11 // pred_check
          %p254 = pneg %p175
        $region30: #{cross_modal_attention.1} parent=11 // pred_check_branch
          %256 = sbr.rel (%p254) target = $region32
        $region31: #{cross_modal_attention.1} parent=11 // pred_region
          _
        $region32: #{cross_modal_attention.1} parent=11 // pred_fallthru
          _
      $region12: #{cross_modal_attention.1} parent=5 // pred_fallthru
        _
      %p257 = scmp.lt.s32.totalorder %s18, 2
      // Predicated region
      $region33: #{cross_modal_attention.1} parent=5 // pred_check
        %p258 = pneg %p257
      $region34: #{cross_modal_attention.1} parent=5 // pred_check_branch
        %260 = sbr.rel (%p258) target = $region36
      $region35: #{cross_modal_attention.1} parent=5 // pred_region
        // Predicated region
        $region37: #{cross_modal_attention.1} parent=35 // pred_check
          %p261 = pneg %p38
        $region38: #{cross_modal_attention.1} parent=35 // pred_check_branch
          %263 = sbr.rel (%p261) target = $region40
        $region39: #{cross_modal_attention.1} parent=35 // pred_region
          %p264 = scmp.lt.s32.totalorder %s18, 1
          %s265 = scalar_select %p264, %s18, 1
          %s266 = smul.addr %s265, 2
          %s267 = smul.addr %s266, 8
          %s268 = scalar_lea.vmem %s0, %s267
        $region40: #{cross_modal_attention.1} parent=35 // pred_fallthru
          _
        // Predicated region
        $region41: #{cross_modal_attention.1} parent=35 // pred_check
          %p269 = pneg %p64
        $region42: #{cross_modal_attention.1} parent=35 // pred_check_branch
          %271 = sbr.rel (%p269) target = $region44
        $region43: #{cross_modal_attention.1} parent=35 // pred_region
          %p272 = scmp.lt.s32.totalorder %s18, 1
          %s273 = scalar_select %p272, %s18, 1
          %s274 = smul.addr %s273, 8
          %s275 = scalar_lea.vmem %s1, %s274
        $region44: #{cross_modal_attention.1} parent=35 // pred_fallthru
          _
      $region36: #{cross_modal_attention.1} parent=5 // pred_fallthru
        _
      %p276 = scmp.le.s32.totalorder 1, %s18
      %p277 = scmp.lt.s32.totalorder %s18, 3
      %p278 = pnand %p276, %p277
      %p279 = pneg %p278
      // Predicated region
      $region45: #{cross_modal_attention.1} parent=5 // pred_check
        _
      $region46: #{cross_modal_attention.1} parent=5 // pred_check_branch
        %281 = sbr.rel (%p278) target = $region48
      $region47: #{cross_modal_attention.1} parent=5 // pred_region
        %s282 = ssub.s32 %s18, 1
        %p283 = scmp.lt.s32.totalorder %s23, 1
        %s284 = scalar_select %p283, %s23, 1
        %s285 = smul.addr %s284, 2
        %s286 = smul.addr %s285, 8
        %s287 = scalar_lea.vmem %s0, %s286
        %p288 = pneg %p44
        %p289 = pneg %p41
        %p290 = scmp.lt.s32.totalorder %s23, 1
        %s291 = scalar_select %p290, %s23, 1
        %s292 = smul.addr %s291, 8
        %s293 = scalar_lea.vmem %s1, %s292
        %p294 = pneg %p70
        %p295 = pneg %p67
        %p296 = pneg %p91
        %p297 = pneg %p88
        %p298 = pneg %p112
        %p299 = pneg %p109
        %p300 = pneg %p133
        %p301 = pneg %p130
        %p302 = pneg %p154
        %p303 = pneg %p151
        %p304 = pneg %p175
        %p305 = pneg %p172
        %p306 = pneg %p201
        %p307 = pneg %p198
        %s308 = sand.u32 %s188, 1
        %s309 = scalar_lea.sflag [#allocation3], %s308
        %s310 = sand.u32 %s188, 1
        %s311 = smul.addr %s310, 16
        %s312 = scalar_lea.vmem [#allocation2], %s311
        %p313 = pneg %p227
        %p314 = pneg %p224
        %p315 = scmp.lt.s32.totalorder %s23, 1
        %s316 = scalar_select %p315, %s23, 1
        %s317 = smul.addr %s316, 2
        %s318 = smul.addr %s317, 8
        %s319 = scalar_lea.vmem %s8, %s318
        %p320 = scmp.lt.s32.totalorder %s23, 1
        %s321 = scalar_select %p320, %s23, 1
        %s322 = smul.addr %s321, 2
        %s323 = smul.addr %s322, 8
        %s324 = scalar_lea.vmem %s0, %s323
        %p325 = scmp.lt.s32.totalorder %s23, 1
        %s326 = scalar_select %p325, %s23, 1
        %s327 = smul.addr %s326, 8
        %s328 = scalar_lea.vmem %s1, %s327
        %p329 = scmp.lt.s32.totalorder %s23, 1
        %s330 = scalar_select %p329, %s23, 1
        %s331 = smul.addr %s330, 2
        %s332 = smul.addr %s331, 8
        %s333 = scalar_lea.vmem %s8, %s332
        %v334 = vld [vmem:[%s324] sm:$0xff]
        %v335 = vld [vmem:[%s324 + $0x8] sm:$0xff]
        %v336 = vld [vmem:[%s328] sm:$0xff]
        %v337 = vld [vmem:[%s6] sm:$0x1]
        %v338 = vld [vmem:[%s6 + $0x1] sm:$0x1]
        %v339 = vld [vmem:[%s6 + $0x2] sm:$0x1]
        %v340 = vld [vmem:[%s6 + $0x3] sm:$0x1]
        %v341 = vld [vmem:[%s6 + $0x4] sm:$0x1]
        %v342 = vld [vmem:[%s2] sm:$0xff]
        %v343 = vld [vmem:[%s2 + $0x8] sm:$0xff]
        %v344 = vld [vmem:[%s2 + $0x10] sm:$0xff]
        %v345 = vld [vmem:[%s2 + $0x18] sm:$0xff]
        %v346 = vld [vmem:[%s2 + $0x20] sm:$0xff]
        %v347 = vld [vmem:[%s2 + $0x28] sm:$0xff]
        %v348 = vld [vmem:[%s2 + $0x30] sm:$0xff]
        %v349 = vld [vmem:[%s2 + $0x38] sm:$0xff]
        %v350 = vlaneseq
        %v351 = vshrl.u32 %v350, 7
        %v352 = vsub.s32 0, %v351
        %v353 = vrot.slane %v337, %v352
        %vm354 = vcmask 523264
        %v356 = vsel %vm354, %v334, 0
        %v359 = vsel %vm354, %v335, 0
        %361 = vmatprep.subr.mxu0 0.0
        %362 = vmatpush1.msra.mxu0 0.0
        %363 = vmatprep.subr.mxu0 0.0
        %364 = vmatpush1.msra.mxu0 0.0
        %365 = vmatprep.subr.mxu0 0.0
        %366 = vmatpush1.msra.mxu0 0.0
        %367 = vmatprep.subr.mxu0 0.0
        %368 = vmatpush1.msra.mxu0 0.0
        %369 = vmatprep.subr.mxu0 0.0
        %370 = vmatpush1.msra.mxu0 0.0
        %371 = vmatprep.subr.mxu0 0.0
        %372 = vmatpush1.msra.mxu0 0.0
        %373 = vmatprep.subr.mxu0 0.0
        %374 = vmatpush1.msra.mxu0 0.0
        %375 = vmatprep.subr.mxu0 0.0
        %376 = vmatpush1.msra.mxu0 0.0
        %377 = vmatprep.subr.mxu0 0.0
        %378 = vmatpush1.msra.mxu0 %v349
        %379 = vmatprep.subr.mxu0 0.0
        %380 = vmatpush1.msra.mxu0 %v348
        %381 = vmatprep.subr.mxu0 0.0
        %382 = vmatpush1.msra.mxu0 %v347
        %383 = vmatprep.subr.mxu0 0.0
        %384 = vmatpush1.msra.mxu0 %v346
        %385 = vmatprep.subr.mxu0 0.0
        %386 = vmatpush1.msra.mxu0 %v345
        %387 = vmatprep.subr.mxu0 0.0
        %388 = vmatpush1.msra.mxu0 %v344
        %389 = vmatprep.subr.mxu0 0.0
        %390 = vmatpush1.msra.mxu0 %v343
        %391 = vmatprep.subr.mxu0 0.0
        %392 = vmatpush1.msra.mxu0 %v342
        %393 = vmatprep.subr.mxu0 0.0
        %394 = vmatpush2.msra.mxu0 0.0
        %395 = vmatprep.subr.mxu0 0.0
        %396 = vmatpush2.msra.mxu0 0.0
        %397 = vmatprep.subr.mxu0 0.0
        %398 = vmatpush2.msra.mxu0 0.0
        %399 = vmatprep.subr.mxu0 0.0
        %400 = vmatpush2.msra.mxu0 0.0
        %401 = vmatprep.subr.mxu0 0.0
        %402 = vmatpush2.msra.mxu0 0.0
        %403 = vmatprep.subr.mxu0 0.0
        %404 = vmatpush2.msra.mxu0 0.0
        %405 = vmatprep.subr.mxu0 0.0
        %406 = vmatpush2.msra.mxu0 0.0
        %407 = vmatprep.subr.mxu0 0.0
        %408 = vmatpush2.msra.mxu0 0.0
        %409 = vmatprep.subr.mxu0 0.0
        %410 = vmatpush2.msra.mxu0 0.0
        %411 = vmatprep.subr.mxu0 0.0
        %412 = vmatpush2.msra.mxu0 0.0
        %413 = vmatprep.subr.mxu0 0.0
        %414 = vmatpush2.msra.mxu0 0.0
        %415 = vmatprep.subr.mxu0 0.0
        %416 = vmatpush2.msra.mxu0 0.0
        %417 = vmatprep.subr.mxu0 0.0
        %418 = vmatpush2.msra.mxu0 0.0
        %419 = vmatprep.subr.mxu0 0.0
        %420 = vmatpush2.msra.mxu0 0.0
        %421 = vmatprep.subr.mxu0 0.0
        %422 = vmatpush2.msra.mxu0 0.0
        %423 = vmatprep.subr.mxu0 0.0
        %424 = vmatpush2.msra.mxu0 0.0
        %425 = vmatprep.mubr.f32.mxu0 0.0
        %426 = vmatmul.mubr.f32.gmra.mxu0 %v356
        %v427 = vpop.f32.mrf.mxu0
        %v428 = vadd.f32 %v353, %v427
        %v429 = vpop.f32.mrf.mxu0
        %430 = vmatprep.mubr.f32.mxu0 0.0
        %431 = vmatmul.mubr.f32.gmra.mxu0 %v359
        %v432 = vpop.f32.mrf.mxu0
        %v433 = vadd.f32 %v353, %v432
        %v434 = vpop.f32.mrf.mxu0
        %435 = vdwg.mxu0
        %v436 = vld [vmem:[%s3] sm:$0xff]
        %v437 = vld [vmem:[%s3 + $0x8] sm:$0xff]
        %v438 = vld [vmem:[%s3 + $0x10] sm:$0xff]
        %v439 = vld [vmem:[%s3 + $0x18] sm:$0xff]
        %v440 = vld [vmem:[%s3 + $0x20] sm:$0xff]
        %v441 = vld [vmem:[%s3 + $0x28] sm:$0xff]
        %v442 = vld [vmem:[%s3 + $0x30] sm:$0xff]
        %v443 = vld [vmem:[%s3 + $0x38] sm:$0xff]
        %v444 = vld [vmem:[%s4] sm:$0xff]
        %v445 = vld [vmem:[%s4 + $0x8] sm:$0xff]
        %v446 = vld [vmem:[%s4 + $0x10] sm:$0xff]
        %v447 = vld [vmem:[%s4 + $0x18] sm:$0xff]
        %v448 = vlaneseq
        %v449 = vshrl.u32 %v448, 7
        %v450 = vsub.s32 0, %v449
        %v451 = vrot.slane %v338, %v450
        %vm452 = vcmask 261120
        %v454 = vsel %vm452, %v336, 0
        %456 = vmatprep.subr.mxu0 0.0
        %457 = vmatpush1.msra.mxu0 0.0
        %458 = vmatprep.subr.mxu0 0.0
        %459 = vmatpush1.msra.mxu0 0.0
        %460 = vmatprep.subr.mxu0 0.0
        %461 = vmatpush1.msra.mxu0 0.0
        %462 = vmatprep.subr.mxu0 0.0
        %463 = vmatpush1.msra.mxu0 0.0
        %464 = vmatprep.subr.mxu0 0.0
        %465 = vmatpush1.msra.mxu0 0.0
        %466 = vmatprep.subr.mxu0 0.0
        %467 = vmatpush1.msra.mxu0 0.0
        %468 = vmatprep.subr.mxu0 0.0
        %469 = vmatpush1.msra.mxu0 0.0
        %470 = vmatprep.subr.mxu0 0.0
        %471 = vmatpush1.msra.mxu0 0.0
        %472 = vmatprep.subr.mxu0 0.0
        %473 = vmatpush1.msra.mxu0 0.0
        %474 = vmatprep.subr.mxu0 0.0
        %475 = vmatpush1.msra.mxu0 0.0
        %476 = vmatprep.subr.mxu0 0.0
        %477 = vmatpush1.msra.mxu0 0.0
        %478 = vmatprep.subr.mxu0 0.0
        %479 = vmatpush1.msra.mxu0 0.0
        %480 = vmatprep.subr.mxu0 0.0
        %481 = vmatpush1.msra.mxu0 %v447
        %482 = vmatprep.subr.mxu0 0.0
        %483 = vmatpush1.msra.mxu0 %v446
        %484 = vmatprep.subr.mxu0 0.0
        %485 = vmatpush1.msra.mxu0 %v445
        %486 = vmatprep.subr.mxu0 0.0
        %487 = vmatpush1.msra.mxu0 %v444
        %488 = vmatprep.subr.mxu0 0.0
        %489 = vmatpush2.msra.mxu0 0.0
        %490 = vmatprep.subr.mxu0 0.0
        %491 = vmatpush2.msra.mxu0 0.0
        %492 = vmatprep.subr.mxu0 0.0
        %493 = vmatpush2.msra.mxu0 0.0
        %494 = vmatprep.subr.mxu0 0.0
        %495 = vmatpush2.msra.mxu0 0.0
        %496 = vmatprep.subr.mxu0 0.0
        %497 = vmatpush2.msra.mxu0 0.0
        %498 = vmatprep.subr.mxu0 0.0
        %499 = vmatpush2.msra.mxu0 0.0
        %500 = vmatprep.subr.mxu0 0.0
        %501 = vmatpush2.msra.mxu0 0.0
        %502 = vmatprep.subr.mxu0 0.0
        %503 = vmatpush2.msra.mxu0 0.0
        %504 = vmatprep.subr.mxu0 0.0
        %505 = vmatpush2.msra.mxu0 0.0
        %506 = vmatprep.subr.mxu0 0.0
        %507 = vmatpush2.msra.mxu0 0.0
        %508 = vmatprep.subr.mxu0 0.0
        %509 = vmatpush2.msra.mxu0 0.0
        %510 = vmatprep.subr.mxu0 0.0
        %511 = vmatpush2.msra.mxu0 0.0
        %512 = vmatprep.subr.mxu0 0.0
        %513 = vmatpush2.msra.mxu0 0.0
        %514 = vmatprep.subr.mxu0 0.0
        %515 = vmatpush2.msra.mxu0 0.0
        %516 = vmatprep.subr.mxu0 0.0
        %517 = vmatpush2.msra.mxu0 0.0
        %518 = vmatprep.subr.mxu0 0.0
        %519 = vmatpush2.msra.mxu0 0.0
        %520 = vmatprep.mubr.f32.mxu0 0.0
        %521 = vmatmul.mubr.f32.gmra.mxu0 %v454
        %v522 = vpop.f32.mrf.mxu0
        %v523 = vadd.f32 %v451, %v522
        %v524 = vpop.f32.mrf.mxu0
        %525 = vdwg.mxu0
        %v526 = vld [vmem:[%s5] sm:$0xff]
        %v527 = vld [vmem:[%s5 + $0x8] sm:$0xff]
        %v528 = vld [vmem:[%s5 + $0x10] sm:$0xff]
        %v529 = vld [vmem:[%s5 + $0x18] sm:$0xff]
        %v530 = vld [vmem:[%s5 + $0x20] sm:$0xff]
        %v531 = vld [vmem:[%s5 + $0x28] sm:$0xff]
        %v532 = vld [vmem:[%s5 + $0x30] sm:$0xff]
        %v533 = vld [vmem:[%s5 + $0x38] sm:$0xff]
        %534 = vmatprep.subr.mxu0 0.0
        %535 = vmatpush1.msra.mxu0 0.0
        %536 = vmatprep.subr.mxu0 0.0
        %537 = vmatpush1.msra.mxu0 0.0
        %538 = vmatprep.subr.mxu0 0.0
        %539 = vmatpush1.msra.mxu0 0.0
        %540 = vmatprep.subr.mxu0 0.0
        %541 = vmatpush1.msra.mxu0 0.0
        %542 = vmatprep.subr.mxu0 0.0
        %543 = vmatpush1.msra.mxu0 0.0
        %544 = vmatprep.subr.mxu0 0.0
        %545 = vmatpush1.msra.mxu0 0.0
        %546 = vmatprep.subr.mxu0 0.0
        %547 = vmatpush1.msra.mxu0 0.0
        %548 = vmatprep.subr.mxu0 0.0
        %549 = vmatpush1.msra.mxu0 0.0
        %550 = vmatprep.subr.mxu0 0.0
        %551 = vmatpush1.msra.mxu0 0.0
        %552 = vmatprep.subr.mxu0 0.0
        %553 = vmatpush1.msra.mxu0 0.0
        %554 = vmatprep.subr.mxu0 0.0
        %555 = vmatpush1.msra.mxu0 0.0
        %556 = vmatprep.subr.mxu0 0.0
        %557 = vmatpush1.msra.mxu0 0.0
        %558 = vmatprep.subr.mxu0 %v533
        %559 = vmatpush1.msra.mxu0 %v532
        %560 = vmatprep.subr.mxu0 %v531
        %561 = vmatpush1.msra.mxu0 %v530
        %562 = vmatprep.subr.mxu0 %v529
        %563 = vmatpush1.msra.mxu0 %v528
        %564 = vmatprep.subr.mxu0 %v527
        %565 = vmatpush1.msra.mxu0 %v526
        %566 = vmatprep.subr.mxu0 0.0
        %567 = vmatpush2.msra.mxu0 0.0
        %568 = vmatprep.subr.mxu0 0.0
        %569 = vmatpush2.msra.mxu0 0.0
        %570 = vmatprep.subr.mxu0 0.0
        %571 = vmatpush2.msra.mxu0 0.0
        %572 = vmatprep.subr.mxu0 0.0
        %573 = vmatpush2.msra.mxu0 0.0
        %574 = vmatprep.subr.mxu0 0.0
        %575 = vmatpush2.msra.mxu0 0.0
        %576 = vmatprep.subr.mxu0 0.0
        %577 = vmatpush2.msra.mxu0 0.0
        %578 = vmatprep.subr.mxu0 0.0
        %579 = vmatpush2.msra.mxu0 0.0
        %580 = vmatprep.subr.mxu0 0.0
        %581 = vmatpush2.msra.mxu0 0.0
        %582 = vmatprep.subr.mxu0 0.0
        %583 = vmatpush2.msra.mxu0 0.0
        %584 = vmatprep.subr.mxu0 0.0
        %585 = vmatpush2.msra.mxu0 0.0
        %586 = vmatprep.subr.mxu0 0.0
        %587 = vmatpush2.msra.mxu0 0.0
        %588 = vmatprep.subr.mxu0 0.0
        %589 = vmatpush2.msra.mxu0 0.0
        %590 = vmatprep.subr.mxu0 0.0
        %591 = vmatpush2.msra.mxu0 0.0
        %592 = vmatprep.subr.mxu0 0.0
        %593 = vmatpush2.msra.mxu0 0.0
        %594 = vmatprep.subr.mxu0 0.0
        %595 = vmatpush2.msra.mxu0 0.0
        %596 = vmatprep.subr.mxu0 0.0
        %597 = vmatpush2.msra.mxu0 0.0
        %598 = vmatprep.mubr.f32.mxu0 0.0
        %599 = vmatmul.mubr.f32.gmra.mxu0 %v454
        %v600 = vpop.f32.mrf.mxu0
        %v601 = vadd.f32 0.0, %v600
        %v602 = vpop.f32.mrf.mxu0
        %v603 = vadd.f32 0.0, %v602
        %604 = vdwg.mxu0
        %vm605 = vcmask 130048
        %v607 = vsel %vm605, %v428, 0
        %v610 = vsel %vm605, %v433, 0
        %v613 = vsel %vm605, %v523, 0
        %615 = vmatprep.subr.mxu0 0.0
        %616 = vmatpush1.xpose.msra.mxu0 0.0
        %617 = vmatprep.subr.mxu0 0.0
        %618 = vmatpush1.xpose.msra.mxu0 0.0
        %619 = vmatprep.subr.mxu0 0.0
        %620 = vmatpush1.xpose.msra.mxu0 0.0
        %621 = vmatprep.subr.mxu0 0.0
        %622 = vmatpush1.xpose.msra.mxu0 0.0
        %623 = vmatprep.subr.mxu0 0.0
        %624 = vmatpush1.xpose.msra.mxu0 0.0
        %625 = vmatprep.subr.mxu0 0.0
        %626 = vmatpush1.xpose.msra.mxu0 0.0
        %627 = vmatprep.subr.mxu0 0.0
        %628 = vmatpush1.xpose.msra.mxu0 0.0
        %629 = vmatprep.subr.mxu0 0.0
        %630 = vmatpush1.xpose.msra.mxu0 0.0
        %631 = vmatprep.subr.mxu0 0.0
        %632 = vmatpush1.xpose.msra.mxu0 0.0
        %633 = vmatprep.subr.mxu0 0.0
        %634 = vmatpush1.xpose.msra.mxu0 0.0
        %635 = vmatprep.subr.mxu0 0.0
        %636 = vmatpush1.xpose.msra.mxu0 0.0
        %637 = vmatprep.subr.mxu0 0.0
        %638 = vmatpush1.xpose.msra.mxu0 0.0
        %639 = vmatprep.subr.mxu0 0.0
        %640 = vmatpush1.xpose.msra.mxu0 0.0
        %641 = vmatprep.subr.mxu0 0.0
        %642 = vmatpush1.xpose.msra.mxu0 0.0
        %643 = vmatprep.subr.mxu0 0.0
        %644 = vmatpush1.xpose.msra.mxu0 0.0
        %645 = vmatprep.subr.mxu0 0.0
        %646 = vmatpush1.xpose.msra.mxu0 %v613
        %647 = vmatprep.subr.mxu0 0.0
        %648 = vmatpush2.xpose.msra.mxu0 0.0
        %649 = vmatprep.subr.mxu0 0.0
        %650 = vmatpush2.xpose.msra.mxu0 0.0
        %651 = vmatprep.subr.mxu0 0.0
        %652 = vmatpush2.xpose.msra.mxu0 0.0
        %653 = vmatprep.subr.mxu0 0.0
        %654 = vmatpush2.xpose.msra.mxu0 0.0
        %655 = vmatprep.subr.mxu0 0.0
        %656 = vmatpush2.xpose.msra.mxu0 0.0
        %657 = vmatprep.subr.mxu0 0.0
        %658 = vmatpush2.xpose.msra.mxu0 0.0
        %659 = vmatprep.subr.mxu0 0.0
        %660 = vmatpush2.xpose.msra.mxu0 0.0
        %661 = vmatprep.subr.mxu0 0.0
        %662 = vmatpush2.xpose.msra.mxu0 0.0
        %663 = vmatprep.subr.mxu0 0.0
        %664 = vmatpush2.xpose.msra.mxu0 0.0
        %665 = vmatprep.subr.mxu0 0.0
        %666 = vmatpush2.xpose.msra.mxu0 0.0
        %667 = vmatprep.subr.mxu0 0.0
        %668 = vmatpush2.xpose.msra.mxu0 0.0
        %669 = vmatprep.subr.mxu0 0.0
        %670 = vmatpush2.xpose.msra.mxu0 0.0
        %671 = vmatprep.subr.mxu0 0.0
        %672 = vmatpush2.xpose.msra.mxu0 0.0
        %673 = vmatprep.subr.mxu0 0.0
        %674 = vmatpush2.xpose.msra.mxu0 0.0
        %675 = vmatprep.subr.mxu0 0.0
        %676 = vmatpush2.xpose.msra.mxu0 0.0
        %677 = vmatprep.subr.mxu0 0.0
        %678 = vmatpush2.xpose.msra.mxu0 0.0
        %679 = vmatprep.mubr.f32.mxu0 0.0
        %680 = vmatmul.mubr.f32.gmra.mxu0 %v607
        %v681 = vpop.f32.mrf.mxu0
        %v682 = vadd.f32 0.0, %v681
        %v683 = vpop.f32.mrf.mxu0
        %684 = vmatprep.mubr.f32.mxu0 0.0
        %685 = vmatmul.mubr.f32.gmra.mxu0 %v610
        %v686 = vpop.f32.mrf.mxu0
        %v687 = vadd.f32 0.0, %v686
        %v688 = vpop.f32.mrf.mxu0
        %689 = vdwg.mxu0
        %690 = vrot.lane.b32.xlu0 %v428, 112
        %v691 = vpop.permute.xlu0 %690
        %692 = vrot.lane.b32.xlu0 %v433, 112
        %v693 = vpop.permute.xlu0 %692
        %694 = vrot.lane.b32.xlu0 %v523, 112
        %v695 = vpop.permute.xlu0 %694
        %v696 = vsel %vm605, %v691, 0
        %v698 = vsel %vm605, %v693, 0
        %v700 = vsel %vm605, %v695, 0
        %702 = vmatprep.subr.mxu0 0.0
        %703 = vmatpush1.xpose.msra.mxu0 0.0
        %704 = vmatprep.subr.mxu0 0.0
        %705 = vmatpush1.xpose.msra.mxu0 0.0
        %706 = vmatprep.subr.mxu0 0.0
        %707 = vmatpush1.xpose.msra.mxu0 0.0
        %708 = vmatprep.subr.mxu0 0.0
        %709 = vmatpush1.xpose.msra.mxu0 0.0
        %710 = vmatprep.subr.mxu0 0.0
        %711 = vmatpush1.xpose.msra.mxu0 0.0
        %712 = vmatprep.subr.mxu0 0.0
        %713 = vmatpush1.xpose.msra.mxu0 0.0
        %714 = vmatprep.subr.mxu0 0.0
        %715 = vmatpush1.xpose.msra.mxu0 0.0
        %716 = vmatprep.subr.mxu0 0.0
        %717 = vmatpush1.xpose.msra.mxu0 0.0
        %718 = vmatprep.subr.mxu0 0.0
        %719 = vmatpush1.xpose.msra.mxu0 0.0
        %720 = vmatprep.subr.mxu0 0.0
        %721 = vmatpush1.xpose.msra.mxu0 0.0
        %722 = vmatprep.subr.mxu0 0.0
        %723 = vmatpush1.xpose.msra.mxu0 0.0
        %724 = vmatprep.subr.mxu0 0.0
        %725 = vmatpush1.xpose.msra.mxu0 0.0
        %726 = vmatprep.subr.mxu0 0.0
        %727 = vmatpush1.xpose.msra.mxu0 0.0
        %728 = vmatprep.subr.mxu0 0.0
        %729 = vmatpush1.xpose.msra.mxu0 0.0
        %730 = vmatprep.subr.mxu0 0.0
        %731 = vmatpush1.xpose.msra.mxu0 0.0
        %732 = vmatprep.subr.mxu0 0.0
        %733 = vmatpush1.xpose.msra.mxu0 %v700
        %734 = vmatprep.subr.mxu0 0.0
        %735 = vmatpush2.xpose.msra.mxu0 0.0
        %736 = vmatprep.subr.mxu0 0.0
        %737 = vmatpush2.xpose.msra.mxu0 0.0
        %738 = vmatprep.subr.mxu0 0.0
        %739 = vmatpush2.xpose.msra.mxu0 0.0
        %740 = vmatprep.subr.mxu0 0.0
        %741 = vmatpush2.xpose.msra.mxu0 0.0
        %742 = vmatprep.subr.mxu0 0.0
        %743 = vmatpush2.xpose.msra.mxu0 0.0
        %744 = vmatprep.subr.mxu0 0.0
        %745 = vmatpush2.xpose.msra.mxu0 0.0
        %746 = vmatprep.subr.mxu0 0.0
        %747 = vmatpush2.xpose.msra.mxu0 0.0
        %748 = vmatprep.subr.mxu0 0.0
        %749 = vmatpush2.xpose.msra.mxu0 0.0
        %750 = vmatprep.subr.mxu0 0.0
        %751 = vmatpush2.xpose.msra.mxu0 0.0
        %752 = vmatprep.subr.mxu0 0.0
        %753 = vmatpush2.xpose.msra.mxu0 0.0
        %754 = vmatprep.subr.mxu0 0.0
        %755 = vmatpush2.xpose.msra.mxu0 0.0
        %756 = vmatprep.subr.mxu0 0.0
        %757 = vmatpush2.xpose.msra.mxu0 0.0
        %758 = vmatprep.subr.mxu0 0.0
        %759 = vmatpush2.xpose.msra.mxu0 0.0
        %760 = vmatprep.subr.mxu0 0.0
        %761 = vmatpush2.xpose.msra.mxu0 0.0
        %762 = vmatprep.subr.mxu0 0.0
        %763 = vmatpush2.xpose.msra.mxu0 0.0
        %764 = vmatprep.subr.mxu0 0.0
        %765 = vmatpush2.xpose.msra.mxu0 0.0
        %766 = vmatprep.mubr.f32.mxu0 0.0
        %767 = vmatmul.mubr.f32.gmra.mxu0 %v696
        %v768 = vpop.f32.mrf.mxu0
        %v769 = vadd.f32 0.0, %v768
        %v770 = vpop.f32.mrf.mxu0
        %771 = vmatprep.mubr.f32.mxu0 0.0
        %772 = vmatmul.mubr.f32.gmra.mxu0 %v698
        %v773 = vpop.f32.mrf.mxu0
        %v774 = vadd.f32 0.0, %v773
        %v775 = vpop.f32.mrf.mxu0
        %776 = vdwg.mxu0
        %777 = vrot.lane.b32.xlu0 %v428, 96
        %v778 = vpop.permute.xlu0 %777
        %779 = vrot.lane.b32.xlu0 %v433, 96
        %v780 = vpop.permute.xlu0 %779
        %781 = vrot.lane.b32.xlu0 %v523, 96
        %v782 = vpop.permute.xlu0 %781
        %v783 = vsel %vm605, %v778, 0
        %v785 = vsel %vm605, %v780, 0
        %v787 = vsel %vm605, %v782, 0
        %789 = vmatprep.subr.mxu0 0.0
        %790 = vmatpush1.xpose.msra.mxu0 0.0
        %791 = vmatprep.subr.mxu0 0.0
        %792 = vmatpush1.xpose.msra.mxu0 0.0
        %793 = vmatprep.subr.mxu0 0.0
        %794 = vmatpush1.xpose.msra.mxu0 0.0
        %795 = vmatprep.subr.mxu0 0.0
        %796 = vmatpush1.xpose.msra.mxu0 0.0
        %797 = vmatprep.subr.mxu0 0.0
        %798 = vmatpush1.xpose.msra.mxu0 0.0
        %799 = vmatprep.subr.mxu0 0.0
        %800 = vmatpush1.xpose.msra.mxu0 0.0
        %801 = vmatprep.subr.mxu0 0.0
        %802 = vmatpush1.xpose.msra.mxu0 0.0
        %803 = vmatprep.subr.mxu0 0.0
        %804 = vmatpush1.xpose.msra.mxu0 0.0
        %805 = vmatprep.subr.mxu0 0.0
        %806 = vmatpush1.xpose.msra.mxu0 0.0
        %807 = vmatprep.subr.mxu0 0.0
        %808 = vmatpush1.xpose.msra.mxu0 0.0
        %809 = vmatprep.subr.mxu0 0.0
        %810 = vmatpush1.xpose.msra.mxu0 0.0
        %811 = vmatprep.subr.mxu0 0.0
        %812 = vmatpush1.xpose.msra.mxu0 0.0
        %813 = vmatprep.subr.mxu0 0.0
        %814 = vmatpush1.xpose.msra.mxu0 0.0
        %815 = vmatprep.subr.mxu0 0.0
        %816 = vmatpush1.xpose.msra.mxu0 0.0
        %817 = vmatprep.subr.mxu0 0.0
        %818 = vmatpush1.xpose.msra.mxu0 0.0
        %819 = vmatprep.subr.mxu0 0.0
        %820 = vmatpush1.xpose.msra.mxu0 %v787
        %821 = vmatprep.subr.mxu0 0.0
        %822 = vmatpush2.xpose.msra.mxu0 0.0
        %823 = vmatprep.subr.mxu0 0.0
        %824 = vmatpush2.xpose.msra.mxu0 0.0
        %825 = vmatprep.subr.mxu0 0.0
        %826 = vmatpush2.xpose.msra.mxu0 0.0
        %827 = vmatprep.subr.mxu0 0.0
        %828 = vmatpush2.xpose.msra.mxu0 0.0
        %829 = vmatprep.subr.mxu0 0.0
        %830 = vmatpush2.xpose.msra.mxu0 0.0
        %831 = vmatprep.subr.mxu0 0.0
        %832 = vmatpush2.xpose.msra.mxu0 0.0
        %833 = vmatprep.subr.mxu0 0.0
        %834 = vmatpush2.xpose.msra.mxu0 0.0
        %835 = vmatprep.subr.mxu0 0.0
        %836 = vmatpush2.xpose.msra.mxu0 0.0
        %837 = vmatprep.subr.mxu0 0.0
        %838 = vmatpush2.xpose.msra.mxu0 0.0
        %839 = vmatprep.subr.mxu0 0.0
        %840 = vmatpush2.xpose.msra.mxu0 0.0
        %841 = vmatprep.subr.mxu0 0.0
        %842 = vmatpush2.xpose.msra.mxu0 0.0
        %843 = vmatprep.subr.mxu0 0.0
        %844 = vmatpush2.xpose.msra.mxu0 0.0
        %845 = vmatprep.subr.mxu0 0.0
        %846 = vmatpush2.xpose.msra.mxu0 0.0
        %847 = vmatprep.subr.mxu0 0.0
        %848 = vmatpush2.xpose.msra.mxu0 0.0
        %849 = vmatprep.subr.mxu0 0.0
        %850 = vmatpush2.xpose.msra.mxu0 0.0
        %851 = vmatprep.subr.mxu0 0.0
        %852 = vmatpush2.xpose.msra.mxu0 0.0
        %853 = vmatprep.mubr.f32.mxu0 0.0
        %854 = vmatmul.mubr.f32.gmra.mxu0 %v783
        %v855 = vpop.f32.mrf.mxu0
        %v856 = vadd.f32 0.0, %v855
        %v857 = vpop.f32.mrf.mxu0
        %858 = vmatprep.mubr.f32.mxu0 0.0
        %859 = vmatmul.mubr.f32.gmra.mxu0 %v785
        %v860 = vpop.f32.mrf.mxu0
        %v861 = vadd.f32 0.0, %v860
        %v862 = vpop.f32.mrf.mxu0
        %863 = vdwg.mxu0
        %864 = vrot.lane.b32.xlu0 %v428, 80
        %v865 = vpop.permute.xlu0 %864
        %866 = vrot.lane.b32.xlu0 %v433, 80
        %v867 = vpop.permute.xlu0 %866
        %868 = vrot.lane.b32.xlu0 %v523, 80
        %v869 = vpop.permute.xlu0 %868
        %v870 = vsel %vm605, %v865, 0
        %v872 = vsel %vm605, %v867, 0
        %v874 = vsel %vm605, %v869, 0
        %876 = vmatprep.subr.mxu0 0.0
        %877 = vmatpush1.xpose.msra.mxu0 0.0
        %878 = vmatprep.subr.mxu0 0.0
        %879 = vmatpush1.xpose.msra.mxu0 0.0
        %880 = vmatprep.subr.mxu0 0.0
        %881 = vmatpush1.xpose.msra.mxu0 0.0
        %882 = vmatprep.subr.mxu0 0.0
        %883 = vmatpush1.xpose.msra.mxu0 0.0
        %884 = vmatprep.subr.mxu0 0.0
        %885 = vmatpush1.xpose.msra.mxu0 0.0
        %886 = vmatprep.subr.mxu0 0.0
        %887 = vmatpush1.xpose.msra.mxu0 0.0
        %888 = vmatprep.subr.mxu0 0.0
        %889 = vmatpush1.xpose.msra.mxu0 0.0
        %890 = vmatprep.subr.mxu0 0.0
        %891 = vmatpush1.xpose.msra.mxu0 0.0
        %892 = vmatprep.subr.mxu0 0.0
        %893 = vmatpush1.xpose.msra.mxu0 0.0
        %894 = vmatprep.subr.mxu0 0.0
        %895 = vmatpush1.xpose.msra.mxu0 0.0
        %896 = vmatprep.subr.mxu0 0.0
        %897 = vmatpush1.xpose.msra.mxu0 0.0
        %898 = vmatprep.subr.mxu0 0.0
        %899 = vmatpush1.xpose.msra.mxu0 0.0
        %900 = vmatprep.subr.mxu0 0.0
        %901 = vmatpush1.xpose.msra.mxu0 0.0
        %902 = vmatprep.subr.mxu0 0.0
        %903 = vmatpush1.xpose.msra.mxu0 0.0
        %904 = vmatprep.subr.mxu0 0.0
        %905 = vmatpush1.xpose.msra.mxu0 0.0
        %906 = vmatprep.subr.mxu0 0.0
        %907 = vmatpush1.xpose.msra.mxu0 %v874
        %908 = vmatprep.subr.mxu0 0.0
        %909 = vmatpush2.xpose.msra.mxu0 0.0
        %910 = vmatprep.subr.mxu0 0.0
        %911 = vmatpush2.xpose.msra.mxu0 0.0
        %912 = vmatprep.subr.mxu0 0.0
        %913 = vmatpush2.xpose.msra.mxu0 0.0
        %914 = vmatprep.subr.mxu0 0.0
        %915 = vmatpush2.xpose.msra.mxu0 0.0
        %916 = vmatprep.subr.mxu0 0.0
        %917 = vmatpush2.xpose.msra.mxu0 0.0
        %918 = vmatprep.subr.mxu0 0.0
        %919 = vmatpush2.xpose.msra.mxu0 0.0
        %920 = vmatprep.subr.mxu0 0.0
        %921 = vmatpush2.xpose.msra.mxu0 0.0
        %922 = vmatprep.subr.mxu0 0.0
        %923 = vmatpush2.xpose.msra.mxu0 0.0
        %924 = vmatprep.subr.mxu0 0.0
        %925 = vmatpush2.xpose.msra.mxu0 0.0
        %926 = vmatprep.subr.mxu0 0.0
        %927 = vmatpush2.xpose.msra.mxu0 0.0
        %928 = vmatprep.subr.mxu0 0.0
        %929 = vmatpush2.xpose.msra.mxu0 0.0
        %930 = vmatprep.subr.mxu0 0.0
        %931 = vmatpush2.xpose.msra.mxu0 0.0
        %932 = vmatprep.subr.mxu0 0.0
        %933 = vmatpush2.xpose.msra.mxu0 0.0
        %934 = vmatprep.subr.mxu0 0.0
        %935 = vmatpush2.xpose.msra.mxu0 0.0
        %936 = vmatprep.subr.mxu0 0.0
        %937 = vmatpush2.xpose.msra.mxu0 0.0
        %938 = vmatprep.subr.mxu0 0.0
        %939 = vmatpush2.xpose.msra.mxu0 0.0
        %940 = vmatprep.mubr.f32.mxu0 0.0
        %941 = vmatmul.mubr.f32.gmra.mxu0 %v870
        %v942 = vpop.f32.mrf.mxu0
        %v943 = vadd.f32 0.0, %v942
        %v944 = vpop.f32.mrf.mxu0
        %945 = vmatprep.mubr.f32.mxu0 0.0
        %946 = vmatmul.mubr.f32.gmra.mxu0 %v872
        %v947 = vpop.f32.mrf.mxu0
        %v948 = vadd.f32 0.0, %v947
        %v949 = vpop.f32.mrf.mxu0
        %950 = vdwg.mxu0
        %vm951 = vcmask 64512
        %v952 = vsel %vm951, %v682, -inf
        %953 = vmax.xlane.f32.xlu0 %v952
        %v954 = vpop.xlane.xlu0 %953
        %v955 = vsel %vm951, %v687, -inf
        %956 = vmax.xlane.f32.xlu0 %v955
        %v957 = vpop.xlane.xlu0 %956
        %v958 = vsel %vm951, %v769, -inf
        %959 = vmax.xlane.f32.xlu0 %v958
        %v960 = vpop.xlane.xlu0 %959
        %v961 = vsel %vm951, %v774, -inf
        %962 = vmax.xlane.f32.xlu0 %v961
        %v963 = vpop.xlane.xlu0 %962
        %v964 = vsel %vm951, %v856, -inf
        %965 = vmax.xlane.f32.xlu0 %v964
        %v966 = vpop.xlane.xlu0 %965
        %v967 = vsel %vm951, %v861, -inf
        %968 = vmax.xlane.f32.xlu0 %v967
        %v969 = vpop.xlane.xlu0 %968
        %v970 = vsel %vm951, %v943, -inf
        %971 = vmax.xlane.f32.xlu0 %v970
        %v972 = vpop.xlane.xlu0 %971
        %v973 = vsel %vm951, %v948, -inf
        %974 = vmax.xlane.f32.xlu0 %v973
        %v975 = vpop.xlane.xlu0 %974
        %v976 = vsub.f32 %v682, %v954
        %v977 = vsub.f32 %v687, %v957
        %v978 = vsub.f32 %v769, %v960
        %v979 = vsub.f32 %v774, %v963
        %v980 = vsub.f32 %v856, %v966
        %v981 = vsub.f32 %v861, %v969
        %v982 = vsub.f32 %v943, %v972
        %v983 = vsub.f32 %v948, %v975
        %v984 = vmul.f32 %v976, 1.442695
        %v985 = vpow.pop %v984
        %v986 = vmul.f32 %v977, 1.442695
        %v987 = vpow.pop %v986
        %v988 = vmul.f32 %v978, 1.442695
        %v989 = vpow.pop %v988
        %v990 = vmul.f32 %v979, 1.442695
        %v991 = vpow.pop %v990
        %v992 = vmul.f32 %v980, 1.442695
        %v993 = vpow.pop %v992
        %v994 = vmul.f32 %v981, 1.442695
        %v995 = vpow.pop %v994
        %v996 = vmul.f32 %v982, 1.442695
        %v997 = vpow.pop %v996
        %v998 = vmul.f32 %v983, 1.442695
        %v999 = vpow.pop %v998
        %v1000 = vsel %vm951, %v985, 0.0
        %1001 = vadd.xlane.f32.xlu0 %v1000
        %v1002 = vpop.xlane.xlu0 %1001
        %v1003 = vsel %vm951, %v987, 0.0
        %1004 = vadd.xlane.f32.xlu0 %v1003
        %v1005 = vpop.xlane.xlu0 %1004
        %v1006 = vsel %vm951, %v989, 0.0
        %1007 = vadd.xlane.f32.xlu0 %v1006
        %v1008 = vpop.xlane.xlu0 %1007
        %v1009 = vsel %vm951, %v991, 0.0
        %1010 = vadd.xlane.f32.xlu0 %v1009
        %v1011 = vpop.xlane.xlu0 %1010
        %v1012 = vsel %vm951, %v993, 0.0
        %1013 = vadd.xlane.f32.xlu0 %v1012
        %v1014 = vpop.xlane.xlu0 %1013
        %v1015 = vsel %vm951, %v995, 0.0
        %1016 = vadd.xlane.f32.xlu0 %v1015
        %v1017 = vpop.xlane.xlu0 %1016
        %v1018 = vsel %vm951, %v997, 0.0
        %1019 = vadd.xlane.f32.xlu0 %v1018
        %v1020 = vpop.xlane.xlu0 %1019
        %v1021 = vsel %vm951, %v999, 0.0
        %1022 = vadd.xlane.f32.xlu0 %v1021
        %v1023 = vpop.xlane.xlu0 %1022
        %v1024 = vrcp.pop %v1002
        %v1025 = vrcp.pop %v1005
        %v1026 = vrcp.pop %v1008
        %v1027 = vrcp.pop %v1011
        %v1028 = vrcp.pop %v1014
        %v1029 = vrcp.pop %v1017
        %v1030 = vrcp.pop %v1020
        %v1031 = vrcp.pop %v1023
        %v1032 = vmul.f32 %v985, %v1024
        %v1033 = vmul.f32 %v987, %v1025
        %v1034 = vmul.f32 %v989, %v1026
        %v1035 = vmul.f32 %v991, %v1027
        %v1036 = vmul.f32 %v993, %v1028
        %v1037 = vmul.f32 %v995, %v1029
        %v1038 = vmul.f32 %v997, %v1030
        %v1039 = vmul.f32 %v999, %v1031
        %v1040 = vadd.f32 %v1032, %v1034
        %v1041 = vadd.f32 %v1033, %v1035
        %v1042 = vadd.f32 %v1040, %v1036
        %v1043 = vadd.f32 %v1041, %v1037
        %v1044 = vadd.f32 %v1042, %v1038
        %v1045 = vadd.f32 %v1043, %v1039
        %v1046 = vmul.f32 %v1044, 0.25
        %v1047 = vmul.f32 %v1045, 0.25
        %1048 = vst.msk [vmem:[%s333] sm:$0xff] %vm951, %v1046
        %1049 = vst.msk [vmem:[%s333 + $0x8] sm:$0xff] %vm951, %v1047
        %v1050 = vlaneseq
        %v1051 = vshrl.u32 %v1050, 7
        %v1052 = vsub.s32 0, %v1051
        %v1053 = vrot.slane %v339, %v1052
        %1054 = vmatprep.subr.mxu0 0.0
        %1055 = vmatpush1.msra.mxu0 0.0
        %1056 = vmatprep.subr.mxu0 0.0
        %1057 = vmatpush1.msra.mxu0 0.0
        %1058 = vmatprep.subr.mxu0 0.0
        %1059 = vmatpush1.msra.mxu0 0.0
        %1060 = vmatprep.subr.mxu0 0.0
        %1061 = vmatpush1.msra.mxu0 0.0
        %1062 = vmatprep.subr.mxu0 0.0
        %1063 = vmatpush1.msra.mxu0 0.0
        %1064 = vmatprep.subr.mxu0 0.0
        %1065 = vmatpush1.msra.mxu0 0.0
        %1066 = vmatprep.subr.mxu0 0.0
        %1067 = vmatpush1.msra.mxu0 0.0
        %1068 = vmatprep.subr.mxu0 0.0
        %1069 = vmatpush1.msra.mxu0 0.0
        %1070 = vmatprep.subr.mxu0 0.0
        %1071 = vmatpush1.msra.mxu0 %v443
        %1072 = vmatprep.subr.mxu0 0.0
        %1073 = vmatpush1.msra.mxu0 %v442
        %1074 = vmatprep.subr.mxu0 0.0
        %1075 = vmatpush1.msra.mxu0 %v441
        %1076 = vmatprep.subr.mxu0 0.0
        %1077 = vmatpush1.msra.mxu0 %v440
        %1078 = vmatprep.subr.mxu0 0.0
        %1079 = vmatpush1.msra.mxu0 %v439
        %1080 = vmatprep.subr.mxu0 0.0
        %1081 = vmatpush1.msra.mxu0 %v438
        %1082 = vmatprep.subr.mxu0 0.0
        %1083 = vmatpush1.msra.mxu0 %v437
        %1084 = vmatprep.subr.mxu0 0.0
        %1085 = vmatpush1.msra.mxu0 %v436
        %1086 = vmatprep.subr.mxu0 0.0
        %1087 = vmatpush2.msra.mxu0 0.0
        %1088 = vmatprep.subr.mxu0 0.0
        %1089 = vmatpush2.msra.mxu0 0.0
        %1090 = vmatprep.subr.mxu0 0.0
        %1091 = vmatpush2.msra.mxu0 0.0
        %1092 = vmatprep.subr.mxu0 0.0
        %1093 = vmatpush2.msra.mxu0 0.0
        %1094 = vmatprep.subr.mxu0 0.0
        %1095 = vmatpush2.msra.mxu0 0.0
        %1096 = vmatprep.subr.mxu0 0.0
        %1097 = vmatpush2.msra.mxu0 0.0
        %1098 = vmatprep.subr.mxu0 0.0
        %1099 = vmatpush2.msra.mxu0 0.0
        %1100 = vmatprep.subr.mxu0 0.0
        %1101 = vmatpush2.msra.mxu0 0.0
        %1102 = vmatprep.subr.mxu0 0.0
        %1103 = vmatpush2.msra.mxu0 0.0
        %1104 = vmatprep.subr.mxu0 0.0
        %1105 = vmatpush2.msra.mxu0 0.0
        %1106 = vmatprep.subr.mxu0 0.0
        %1107 = vmatpush2.msra.mxu0 0.0
        %1108 = vmatprep.subr.mxu0 0.0
        %1109 = vmatpush2.msra.mxu0 0.0
        %1110 = vmatprep.subr.mxu0 0.0
        %1111 = vmatpush2.msra.mxu0 0.0
        %1112 = vmatprep.subr.mxu0 0.0
        %1113 = vmatpush2.msra.mxu0 0.0
        %1114 = vmatprep.subr.mxu0 0.0
        %1115 = vmatpush2.msra.mxu0 0.0
        %1116 = vmatprep.subr.mxu0 0.0
        %1117 = vmatpush2.msra.mxu0 0.0
        %1118 = vmatprep.mubr.f32.mxu0 0.0
        %1119 = vmatmul.mubr.f32.gmra.mxu0 %v356
        %v1120 = vpop.f32.mrf.mxu0
        %v1121 = vadd.f32 %v1053, %v1120
        %v1122 = vpop.f32.mrf.mxu0
        %1123 = vmatprep.mubr.f32.mxu0 0.0
        %1124 = vmatmul.mubr.f32.gmra.mxu0 %v359
        %v1125 = vpop.f32.mrf.mxu0
        %v1126 = vadd.f32 %v1053, %v1125
        %v1127 = vpop.f32.mrf.mxu0
        %1128 = vdwg.mxu0
        %v1130 = vsel %vm951, %v1032, 0
        %v1133 = vsel %vm951, %v1033, 0
        %1135 = vmatprep.subr.mxu0 0.0
        %1136 = vmatpush1.msra.mxu0 0.0
        %1137 = vmatprep.subr.mxu0 0.0
        %1138 = vmatpush1.msra.mxu0 0.0
        %1139 = vmatprep.subr.mxu0 0.0
        %1140 = vmatpush1.msra.mxu0 0.0
        %1141 = vmatprep.subr.mxu0 0.0
        %1142 = vmatpush1.msra.mxu0 0.0
        %1143 = vmatprep.subr.mxu0 0.0
        %1144 = vmatpush1.msra.mxu0 0.0
        %1145 = vmatprep.subr.mxu0 0.0
        %1146 = vmatpush1.msra.mxu0 0.0
        %1147 = vmatprep.subr.mxu0 0.0
        %1148 = vmatpush1.msra.mxu0 0.0
        %1149 = vmatprep.subr.mxu0 0.0
        %1150 = vmatpush1.msra.mxu0 0.0
        %1151 = vmatprep.subr.mxu0 0.0
        %1152 = vmatpush1.msra.mxu0 0.0
        %1153 = vmatprep.subr.mxu0 0.0
        %1154 = vmatpush1.msra.mxu0 0.0
        %1155 = vmatprep.subr.mxu0 0.0
        %1156 = vmatpush1.msra.mxu0 0.0
        %1157 = vmatprep.subr.mxu0 0.0
        %1158 = vmatpush1.msra.mxu0 0.0
        %1159 = vmatprep.subr.mxu0 0.0
        %1160 = vmatpush1.msra.mxu0 0.0
        %1161 = vmatprep.subr.mxu0 0.0
        %1162 = vmatpush1.msra.mxu0 0.0
        %1163 = vmatprep.subr.mxu0 0.0
        %1164 = vmatpush1.msra.mxu0 0.0
        %1165 = vmatprep.subr.mxu0 0.0
        %1166 = vmatpush1.msra.mxu0 %v601
        %1167 = vmatprep.subr.mxu0 0.0
        %1168 = vmatpush2.msra.mxu0 0.0
        %1169 = vmatprep.subr.mxu0 0.0
        %1170 = vmatpush2.msra.mxu0 0.0
        %1171 = vmatprep.subr.mxu0 0.0
        %1172 = vmatpush2.msra.mxu0 0.0
        %1173 = vmatprep.subr.mxu0 0.0
        %1174 = vmatpush2.msra.mxu0 0.0
        %1175 = vmatprep.subr.mxu0 0.0
        %1176 = vmatpush2.msra.mxu0 0.0
        %1177 = vmatprep.subr.mxu0 0.0
        %1178 = vmatpush2.msra.mxu0 0.0
        %1179 = vmatprep.subr.mxu0 0.0
        %1180 = vmatpush2.msra.mxu0 0.0
        %1181 = vmatprep.subr.mxu0 0.0
        %1182 = vmatpush2.msra.mxu0 0.0
        %1183 = vmatprep.subr.mxu0 0.0
        %1184 = vmatpush2.msra.mxu0 0.0
        %1185 = vmatprep.subr.mxu0 0.0
        %1186 = vmatpush2.msra.mxu0 0.0
        %1187 = vmatprep.subr.mxu0 0.0
        %1188 = vmatpush2.msra.mxu0 0.0
        %1189 = vmatprep.subr.mxu0 0.0
        %1190 = vmatpush2.msra.mxu0 0.0
        %1191 = vmatprep.subr.mxu0 0.0
        %1192 = vmatpush2.msra.mxu0 0.0
        %1193 = vmatprep.subr.mxu0 0.0
        %1194 = vmatpush2.msra.mxu0 0.0
        %1195 = vmatprep.subr.mxu0 0.0
        %1196 = vmatpush2.msra.mxu0 0.0
        %1197 = vmatprep.subr.mxu0 0.0
        %1198 = vmatpush2.msra.mxu0 0.0
        %1199 = vmatprep.mubr.f32.mxu0 0.0
        %1200 = vmatmul.mubr.f32.gmra.mxu0 %v1130
        %v1201 = vpop.f32.mrf.mxu0
        %v1202 = vadd.f32 0.0, %v1201
        %v1203 = vpop.f32.mrf.mxu0
        %1204 = vmatprep.mubr.f32.mxu0 0.0
        %1205 = vmatmul.mubr.f32.gmra.mxu0 %v1133
        %v1206 = vpop.f32.mrf.mxu0
        %v1207 = vadd.f32 0.0, %v1206
        %v1208 = vpop.f32.mrf.mxu0
        %1209 = vdwg.mxu0
        %v1210 = vadd.f32 %v1121, %v1202
        %v1211 = vadd.f32 %v1126, %v1207
        %1213 = vrot.lane.b32.xlu0 %v601, 64
        %v1214 = vpop.permute.xlu0 %1213
        %v1217 = vsel %vm951, %v1034, 0
        %v1220 = vsel %vm951, %v1035, 0
        %1222 = vmatprep.subr.mxu0 0.0
        %1223 = vmatpush1.msra.mxu0 0.0
        %1224 = vmatprep.subr.mxu0 0.0
        %1225 = vmatpush1.msra.mxu0 0.0
        %1226 = vmatprep.subr.mxu0 0.0
        %1227 = vmatpush1.msra.mxu0 0.0
        %1228 = vmatprep.subr.mxu0 0.0
        %1229 = vmatpush1.msra.mxu0 0.0
        %1230 = vmatprep.subr.mxu0 0.0
        %1231 = vmatpush1.msra.mxu0 0.0
        %1232 = vmatprep.subr.mxu0 0.0
        %1233 = vmatpush1.msra.mxu0 0.0
        %1234 = vmatprep.subr.mxu0 0.0
        %1235 = vmatpush1.msra.mxu0 0.0
        %1236 = vmatprep.subr.mxu0 0.0
        %1237 = vmatpush1.msra.mxu0 0.0
        %1238 = vmatprep.subr.mxu0 0.0
        %1239 = vmatpush1.msra.mxu0 0.0
        %1240 = vmatprep.subr.mxu0 0.0
        %1241 = vmatpush1.msra.mxu0 0.0
        %1242 = vmatprep.subr.mxu0 0.0
        %1243 = vmatpush1.msra.mxu0 0.0
        %1244 = vmatprep.subr.mxu0 0.0
        %1245 = vmatpush1.msra.mxu0 0.0
        %1246 = vmatprep.subr.mxu0 0.0
        %1247 = vmatpush1.msra.mxu0 0.0
        %1248 = vmatprep.subr.mxu0 0.0
        %1249 = vmatpush1.msra.mxu0 0.0
        %1250 = vmatprep.subr.mxu0 0.0
        %1251 = vmatpush1.msra.mxu0 0.0
        %1252 = vmatprep.subr.mxu0 0.0
        %1253 = vmatpush1.msra.mxu0 %v1214
        %1254 = vmatprep.subr.mxu0 0.0
        %1255 = vmatpush2.msra.mxu0 0.0
        %1256 = vmatprep.subr.mxu0 0.0
        %1257 = vmatpush2.msra.mxu0 0.0
        %1258 = vmatprep.subr.mxu0 0.0
        %1259 = vmatpush2.msra.mxu0 0.0
        %1260 = vmatprep.subr.mxu0 0.0
        %1261 = vmatpush2.msra.mxu0 0.0
        %1262 = vmatprep.subr.mxu0 0.0
        %1263 = vmatpush2.msra.mxu0 0.0
        %1264 = vmatprep.subr.mxu0 0.0
        %1265 = vmatpush2.msra.mxu0 0.0
        %1266 = vmatprep.subr.mxu0 0.0
        %1267 = vmatpush2.msra.mxu0 0.0
        %1268 = vmatprep.subr.mxu0 0.0
        %1269 = vmatpush2.msra.mxu0 0.0
        %1270 = vmatprep.subr.mxu0 0.0
        %1271 = vmatpush2.msra.mxu0 0.0
        %1272 = vmatprep.subr.mxu0 0.0
        %1273 = vmatpush2.msra.mxu0 0.0
        %1274 = vmatprep.subr.mxu0 0.0
        %1275 = vmatpush2.msra.mxu0 0.0
        %1276 = vmatprep.subr.mxu0 0.0
        %1277 = vmatpush2.msra.mxu0 0.0
        %1278 = vmatprep.subr.mxu0 0.0
        %1279 = vmatpush2.msra.mxu0 0.0
        %1280 = vmatprep.subr.mxu0 0.0
        %1281 = vmatpush2.msra.mxu0 0.0
        %1282 = vmatprep.subr.mxu0 0.0
        %1283 = vmatpush2.msra.mxu0 0.0
        %1284 = vmatprep.subr.mxu0 0.0
        %1285 = vmatpush2.msra.mxu0 0.0
        %1286 = vmatprep.mubr.f32.mxu0 0.0
        %1287 = vmatmul.mubr.f32.gmra.mxu0 %v1217
        %v1288 = vpop.f32.mrf.mxu0
        %v1289 = vadd.f32 0.0, %v1288
        %v1290 = vpop.f32.mrf.mxu0
        %1291 = vmatprep.mubr.f32.mxu0 0.0
        %1292 = vmatmul.mubr.f32.gmra.mxu0 %v1220
        %v1293 = vpop.f32.mrf.mxu0
        %v1294 = vadd.f32 0.0, %v1293
        %v1295 = vpop.f32.mrf.mxu0
        %1296 = vdwg.mxu0
        %v1297 = vadd.f32 %v1210, %v1289
        %v1298 = vadd.f32 %v1211, %v1294
        %v1300 = vsel %vm951, %v1036, 0
        %v1303 = vsel %vm951, %v1037, 0
        %1305 = vmatprep.subr.mxu0 0.0
        %1306 = vmatpush1.msra.mxu0 0.0
        %1307 = vmatprep.subr.mxu0 0.0
        %1308 = vmatpush1.msra.mxu0 0.0
        %1309 = vmatprep.subr.mxu0 0.0
        %1310 = vmatpush1.msra.mxu0 0.0
        %1311 = vmatprep.subr.mxu0 0.0
        %1312 = vmatpush1.msra.mxu0 0.0
        %1313 = vmatprep.subr.mxu0 0.0
        %1314 = vmatpush1.msra.mxu0 0.0
        %1315 = vmatprep.subr.mxu0 0.0
        %1316 = vmatpush1.msra.mxu0 0.0
        %1317 = vmatprep.subr.mxu0 0.0
        %1318 = vmatpush1.msra.mxu0 0.0
        %1319 = vmatprep.subr.mxu0 0.0
        %1320 = vmatpush1.msra.mxu0 0.0
        %1321 = vmatprep.subr.mxu0 0.0
        %1322 = vmatpush1.msra.mxu0 0.0
        %1323 = vmatprep.subr.mxu0 0.0
        %1324 = vmatpush1.msra.mxu0 0.0
        %1325 = vmatprep.subr.mxu0 0.0
        %1326 = vmatpush1.msra.mxu0 0.0
        %1327 = vmatprep.subr.mxu0 0.0
        %1328 = vmatpush1.msra.mxu0 0.0
        %1329 = vmatprep.subr.mxu0 0.0
        %1330 = vmatpush1.msra.mxu0 0.0
        %1331 = vmatprep.subr.mxu0 0.0
        %1332 = vmatpush1.msra.mxu0 0.0
        %1333 = vmatprep.subr.mxu0 0.0
        %1334 = vmatpush1.msra.mxu0 0.0
        %1335 = vmatprep.subr.mxu0 0.0
        %1336 = vmatpush1.msra.mxu0 %v603
        %1337 = vmatprep.subr.mxu0 0.0
        %1338 = vmatpush2.msra.mxu0 0.0
        %1339 = vmatprep.subr.mxu0 0.0
        %1340 = vmatpush2.msra.mxu0 0.0
        %1341 = vmatprep.subr.mxu0 0.0
        %1342 = vmatpush2.msra.mxu0 0.0
        %1343 = vmatprep.subr.mxu0 0.0
        %1344 = vmatpush2.msra.mxu0 0.0
        %1345 = vmatprep.subr.mxu0 0.0
        %1346 = vmatpush2.msra.mxu0 0.0
        %1347 = vmatprep.subr.mxu0 0.0
        %1348 = vmatpush2.msra.mxu0 0.0
        %1349 = vmatprep.subr.mxu0 0.0
        %1350 = vmatpush2.msra.mxu0 0.0
        %1351 = vmatprep.subr.mxu0 0.0
        %1352 = vmatpush2.msra.mxu0 0.0
        %1353 = vmatprep.subr.mxu0 0.0
        %1354 = vmatpush2.msra.mxu0 0.0
        %1355 = vmatprep.subr.mxu0 0.0
        %1356 = vmatpush2.msra.mxu0 0.0
        %1357 = vmatprep.subr.mxu0 0.0
        %1358 = vmatpush2.msra.mxu0 0.0
        %1359 = vmatprep.subr.mxu0 0.0
        %1360 = vmatpush2.msra.mxu0 0.0
        %1361 = vmatprep.subr.mxu0 0.0
        %1362 = vmatpush2.msra.mxu0 0.0
        %1363 = vmatprep.subr.mxu0 0.0
        %1364 = vmatpush2.msra.mxu0 0.0
        %1365 = vmatprep.subr.mxu0 0.0
        %1366 = vmatpush2.msra.mxu0 0.0
        %1367 = vmatprep.subr.mxu0 0.0
        %1368 = vmatpush2.msra.mxu0 0.0
        %1369 = vmatprep.mubr.f32.mxu0 0.0
        %1370 = vmatmul.mubr.f32.gmra.mxu0 %v1300
        %v1371 = vpop.f32.mrf.mxu0
        %v1372 = vadd.f32 0.0, %v1371
        %v1373 = vpop.f32.mrf.mxu0
        %1374 = vmatprep.mubr.f32.mxu0 0.0
        %1375 = vmatmul.mubr.f32.gmra.mxu0 %v1303
        %v1376 = vpop.f32.mrf.mxu0
        %v1377 = vadd.f32 0.0, %v1376
        %v1378 = vpop.f32.mrf.mxu0
        %1379 = vdwg.mxu0
        %v1380 = vadd.f32 %v1297, %v1372
        %v1381 = vadd.f32 %v1298, %v1377
        %1383 = vrot.lane.b32.xlu0 %v603, 64
        %v1384 = vpop.permute.xlu0 %1383
        %v1387 = vsel %vm951, %v1038, 0
        %v1390 = vsel %vm951, %v1039, 0
        %1392 = vmatprep.subr.mxu0 0.0
        %1393 = vmatpush1.msra.mxu0 0.0
        %1394 = vmatprep.subr.mxu0 0.0
        %1395 = vmatpush1.msra.mxu0 0.0
        %1396 = vmatprep.subr.mxu0 0.0
        %1397 = vmatpush1.msra.mxu0 0.0
        %1398 = vmatprep.subr.mxu0 0.0
        %1399 = vmatpush1.msra.mxu0 0.0
        %1400 = vmatprep.subr.mxu0 0.0
        %1401 = vmatpush1.msra.mxu0 0.0
        %1402 = vmatprep.subr.mxu0 0.0
        %1403 = vmatpush1.msra.mxu0 0.0
        %1404 = vmatprep.subr.mxu0 0.0
        %1405 = vmatpush1.msra.mxu0 0.0
        %1406 = vmatprep.subr.mxu0 0.0
        %1407 = vmatpush1.msra.mxu0 0.0
        %1408 = vmatprep.subr.mxu0 0.0
        %1409 = vmatpush1.msra.mxu0 0.0
        %1410 = vmatprep.subr.mxu0 0.0
        %1411 = vmatpush1.msra.mxu0 0.0
        %1412 = vmatprep.subr.mxu0 0.0
        %1413 = vmatpush1.msra.mxu0 0.0
        %1414 = vmatprep.subr.mxu0 0.0
        %1415 = vmatpush1.msra.mxu0 0.0
        %1416 = vmatprep.subr.mxu0 0.0
        %1417 = vmatpush1.msra.mxu0 0.0
        %1418 = vmatprep.subr.mxu0 0.0
        %1419 = vmatpush1.msra.mxu0 0.0
        %1420 = vmatprep.subr.mxu0 0.0
        %1421 = vmatpush1.msra.mxu0 0.0
        %1422 = vmatprep.subr.mxu0 0.0
        %1423 = vmatpush1.msra.mxu0 %v1384
        %1424 = vmatprep.subr.mxu0 0.0
        %1425 = vmatpush2.msra.mxu0 0.0
        %1426 = vmatprep.subr.mxu0 0.0
        %1427 = vmatpush2.msra.mxu0 0.0
        %1428 = vmatprep.subr.mxu0 0.0
        %1429 = vmatpush2.msra.mxu0 0.0
        %1430 = vmatprep.subr.mxu0 0.0
        %1431 = vmatpush2.msra.mxu0 0.0
        %1432 = vmatprep.subr.mxu0 0.0
        %1433 = vmatpush2.msra.mxu0 0.0
        %1434 = vmatprep.subr.mxu0 0.0
        %1435 = vmatpush2.msra.mxu0 0.0
        %1436 = vmatprep.subr.mxu0 0.0
        %1437 = vmatpush2.msra.mxu0 0.0
        %1438 = vmatprep.subr.mxu0 0.0
        %1439 = vmatpush2.msra.mxu0 0.0
        %1440 = vmatprep.subr.mxu0 0.0
        %1441 = vmatpush2.msra.mxu0 0.0
        %1442 = vmatprep.subr.mxu0 0.0
        %1443 = vmatpush2.msra.mxu0 0.0
        %1444 = vmatprep.subr.mxu0 0.0
        %1445 = vmatpush2.msra.mxu0 0.0
        %1446 = vmatprep.subr.mxu0 0.0
        %1447 = vmatpush2.msra.mxu0 0.0
        %1448 = vmatprep.subr.mxu0 0.0
        %1449 = vmatpush2.msra.mxu0 0.0
        %1450 = vmatprep.subr.mxu0 0.0
        %1451 = vmatpush2.msra.mxu0 0.0
        %1452 = vmatprep.subr.mxu0 0.0
        %1453 = vmatpush2.msra.mxu0 0.0
        %1454 = vmatprep.subr.mxu0 0.0
        %1455 = vmatpush2.msra.mxu0 0.0
        %1456 = vmatprep.mubr.f32.mxu0 0.0
        %1457 = vmatmul.mubr.f32.gmra.mxu0 %v1387
        %v1458 = vpop.f32.mrf.mxu0
        %v1459 = vadd.f32 0.0, %v1458
        %v1460 = vpop.f32.mrf.mxu0
        %1461 = vmatprep.mubr.f32.mxu0 0.0
        %1462 = vmatmul.mubr.f32.gmra.mxu0 %v1390
        %v1463 = vpop.f32.mrf.mxu0
        %v1464 = vadd.f32 0.0, %v1463
        %v1465 = vpop.f32.mrf.mxu0
        %1466 = vdwg.mxu0
        %v1467 = vadd.f32 %v1380, %v1459
        %v1468 = vadd.f32 %v1381, %v1464
        %v1469 = vsel %vm354, %v1467, 0.0
        %1470 = vadd.xlane.f32.xlu0 %v1469
        %v1471 = vpop.xlane.xlu0 %1470
        %v1472 = vsel %vm354, %v1468, 0.0
        %1473 = vadd.xlane.f32.xlu0 %v1472
        %v1474 = vpop.xlane.xlu0 %1473
        %v1475 = vrcp.pop 64.0
        %v1476 = vmul.f32 %v1471, %v1475
        %v1477 = vmul.f32 %v1474, %v1475
        %v1478 = vsub.f32 %v1467, %v1476
        %v1479 = vsub.f32 %v1468, %v1477
        %v1480 = vmul.f32 %v1478, %v1478
        %v1481 = vmul.f32 %v1479, %v1479
        %v1482 = vsel %vm354, %v1480, 0.0
        %1483 = vadd.xlane.f32.xlu0 %v1482
        %v1484 = vpop.xlane.xlu0 %1483
        %v1485 = vsel %vm354, %v1481, 0.0
        %1486 = vadd.xlane.f32.xlu0 %v1485
        %v1487 = vpop.xlane.xlu0 %1486
        %v1488 = vmul.f32 %v1484, %v1475
        %v1489 = vmul.f32 %v1487, %v1475
        %v1490 = vadd.f32 %v1488, 1e-05
        %v1491 = vadd.f32 %v1489, 1e-05
        %v1492 = vrsqrt.pop %v1490
        %v1493 = vrsqrt.pop %v1491
        %v1494 = vmul.f32 %v1478, %v1492
        %v1495 = vmul.f32 %v1479, %v1493
        %v1496 = vlaneseq
        %v1497 = vshrl.u32 %v1496, 7
        %v1498 = vsub.s32 0, %v1497
        %v1499 = vrot.slane %v340, %v1498
        %v1500 = vmul.f32 %v1494, %v1499
        %v1501 = vmul.f32 %v1495, %v1499
        %v1502 = vlaneseq
        %v1503 = vshrl.u32 %v1502, 7
        %v1504 = vsub.s32 0, %v1503
        %v1505 = vrot.slane %v341, %v1504
        %v1506 = vadd.f32 %v1500, %v1505
        %v1507 = vadd.f32 %v1501, %v1505
        %v1508 = vmax.f32 %v1506, 0.0
        %v1509 = vmax.f32 %v1507, 0.0
        %1510 = vst.msk [vmem:[%s312] sm:$0xff] %vm354, %v1508
        %1511 = vst.msk [vmem:[%s312 + $0x8] sm:$0xff] %vm354, %v1509
        %s1512 = sand.u32 %s188, 1
        %s1513 = scalar_lea.sflag [#allocation3], %s1512
        %s1514 = sand.u32 %s188, 1
        %s1515 = smul.addr %s1514, 16
        %s1516 = scalar_lea.vmem [#allocation2], %s1515
        %p1517 = scmp.lt.s32.totalorder %s23, 1
        %s1518 = scalar_select %p1517, %s23, 1
        %s1519 = smul.addr %s1518, 2
        %s1520 = smul.addr %s1519, 8
        %s1521 = scalar_lea.vmem %s8, %s1520
        // Predicated region
        $region49: #{cross_modal_attention.1} parent=47 // pred_check
          %p1522 = pneg %p198
        $region50: #{cross_modal_attention.1} parent=47 // pred_check_branch
          %1524 = sbr.rel (%p1522) target = $region52
        $region51: #{cross_modal_attention.1} parent=47 // pred_region
          %s1526 = ssub.s32 256, 256
          %1527 = vsyncadd %s1513, %s1526
          %s1528 = smul.addr %s23, 2
          %s1529 = smul.addr %s1528, 128
          %s1530 = scalar_lea.hbm %s7, %s1529
          %s1531 = sshll.u32 %s1516, 4
          %s1532 = int_to_ptr.vmem [resolvable:$true] %s1531
          %1537 = dma.vmem_to_hbm [thread:$0]  %s1532, 256, %s1530, %s1513, 128, 128, 8
        $region52: #{cross_modal_attention.1} parent=47 // pred_fallthru
          _
        // Predicated region
        $region53: #{cross_modal_attention.1} parent=47 // pred_check
          %p1538 = pneg %p224
        $region54: #{cross_modal_attention.1} parent=47 // pred_check_branch
          %1540 = sbr.rel (%p1538) target = $region56
        $region55: #{cross_modal_attention.1} parent=47 // pred_region
          _
        $region56: #{cross_modal_attention.1} parent=47 // pred_fallthru
          _
      $region48: #{cross_modal_attention.1} parent=5 // pred_fallthru
        _
      %p1541 = scmp.le.s32.totalorder 2, %s18
      // Predicated region
      $region57: #{cross_modal_attention.1} parent=5 // pred_check
        %p1542 = pneg %p1541
      $region58: #{cross_modal_attention.1} parent=5 // pred_check_branch
        %1544 = sbr.rel (%p1542) target = $region60
      $region59: #{cross_modal_attention.1} parent=5 // pred_region
        %s1545 = ssub.s32 %s18, 2
        // Predicated region
        $region61: #{cross_modal_attention.1} parent=59 // pred_check
          %p1546 = pneg %p204
        $region62: #{cross_modal_attention.1} parent=59 // pred_check_branch
          %1548 = sbr.rel (%p1546) target = $region64
        $region63: #{cross_modal_attention.1} parent=59 // pred_region
          %s1549 = sand.u32 %s189, 1
          %s1550 = scalar_lea.sflag [#allocation3], %s1549
          %s1551 = sand.u32 %s189, 1
          %s1552 = smul.addr %s1551, 16
          %s1553 = scalar_lea.vmem [#allocation2], %s1552
          %1554 = dma.done %s1550, 256
        $region64: #{cross_modal_attention.1} parent=59 // pred_fallthru
          _
        // Predicated region
        $region65: #{cross_modal_attention.1} parent=59 // pred_check
          %p1555 = pneg %p230
        $region66: #{cross_modal_attention.1} parent=59 // pred_check_branch
          %1557 = sbr.rel (%p1555) target = $region68
        $region67: #{cross_modal_attention.1} parent=59 // pred_region
          %p1558 = scmp.lt.s32.totalorder %s24, 1
          %s1559 = scalar_select %p1558, %s24, 1
          %s1560 = smul.addr %s1559, 2
          %s1561 = smul.addr %s1560, 8
          %s1562 = scalar_lea.vmem %s8, %s1561
        $region68: #{cross_modal_attention.1} parent=59 // pred_fallthru
          _
      $region60: #{cross_modal_attention.1} parent=5 // pred_fallthru
        _
    $region6: #{cross_modal_attention.1} parent=1 // loop_footer
      %s22 = sadd.s32 1, %s18
    $region7: #{cross_modal_attention.1} parent=1 // loop_footer_branch
      %17 = sbr.rel target = $region3
    $region8: #{cross_modal_attention.1} parent=1 // loop_exit
      _
    %1563 = vsyncpa [#allocation3], 1
    %s1564 = scalar_lea.sflag [#allocation3], 1
    %1565 = vsyncpa %s1564, 1

</llo_original>
